<compile_context>
chip_gen: v7x
topology: tpu7x:2x2x1
jax: 0.10.0
libtpu: 0.0.40
codegen_flags: <defaults>
</compile_context>

<pallas_src>
import functools

import jax
import jax.numpy as jnp
from jax.experimental import pallas as pl
from jax.experimental.pallas import tpu as pltpu

_EPS = 1e-5
_LANE = 128


def _round_up(v, m):
    return (v + m - 1) // m * m


def _compiler_params():
    return pltpu.CompilerParams(
        dimension_semantics=("parallel",),   # image axis shards across v7x's 2 TCs
        vmem_limit_bytes=32 * 1024 * 1024,   # blocks sized well under v7x's 64 MiB VMEM
    )


# ----------------------------- Pallas kernels ------------------------------ #

def _conv3x3_stats_kernel(xph_ref, w_ref, acc_ref, sum_ref, ssq_ref, *,
                          stride, ho, wo):
    """Fused 3x3 conv: 9 accumulated bf16 MXU matmuls over an in-VMEM padded
    image tile + per-image partial BN statistics (sum / sum-of-squares)."""
    acc_ref[...] = jnp.zeros_like(acc_ref)
    for dy in range(3):
        for dx in range(3):
            phase = (dy % stride) * stride + (dx % stride)
            a0, b0 = dy // stride, dx // stride
            patch = xph_ref[0, phase, a0:a0 + ho, b0:b0 + wo, :]
            patch = patch.reshape(ho * wo, patch.shape[-1])
            acc_ref[...] += jnp.dot(patch, w_ref[dy * 3 + dx],
                                    preferred_element_type=jnp.float32)
    acc = acc_ref[...]
    sum_ref[0] = jnp.sum(acc, axis=0, keepdims=True)
    ssq_ref[0] = jnp.sum(acc * acc, axis=0, keepdims=True)


def _matmul_stats_kernel(x_ref, w_ref, acc_ref, sum_ref, ssq_ref):
    """1x1 shortcut conv as a bf16 MXU matmul + per-image partial BN stats."""
    acc = jnp.dot(x_ref[...], w_ref[...], preferred_element_type=jnp.float32)
    acc_ref[...] = acc
    sum_ref[0] = jnp.sum(acc, axis=0, keepdims=True)
    ssq_ref[0] = jnp.sum(acc * acc, axis=0, keepdims=True)


def _bn_relu_pad_kernel(acc_ref, scale_ref, shift_ref, out_ref, *, ho, wo):
    """BN-affine + ReLU epilogue; emits the spatially padded bf16 NHWC tile that
    feeds the next 3x3 conv directly (saves an HBM pad round-trip)."""
    y = jnp.maximum(acc_ref[...] * scale_ref[...] + shift_ref[...], 0.0)
    out_ref[...] = jnp.zeros_like(out_ref)
    out_ref[0, 0, 1:1 + ho, 1:1 + wo, :] = (
        y.reshape(ho, wo, y.shape[-1]).astype(out_ref.dtype))


def _bn_add_relu_kernel(acc_ref, short_ref, sc_ref, sh_ref, ssc_ref, ssh_ref,
                        out_ref):
    """Final fused epilogue: BN(conv2) + BN/mask(shortcut) + residual add + ReLU."""
    main = acc_ref[...] * sc_ref[...] + sh_ref[...]
    short = short_ref[...].astype(jnp.float32) * ssc_ref[...] + ssh_ref[...]
    out_ref[...] = jnp.maximum(main + short, 0.0)


# --------------------------- pallas_call wrappers --------------------------- #

def conv3x3_stats(phases, w_mat, *, n, ho, wo, stride):
    ss, hs, ws, cin_p = phases.shape[1], phases.shape[2], phases.shape[3], phases.shape[4]
    cout_p = w_mat.shape[-1]
    rows = n * ho * wo
    kern = functools.partial(_conv3x3_stats_kernel, stride=stride, ho=ho, wo=wo)
    cost = pl.CostEstimate(
        flops=2 * rows * 9 * cin_p * cout_p, transcendentals=0,
        bytes_accessed=(phases.size * 2 + w_mat.size * 2
                        + rows * cout_p * 4 + 2 * n * cout_p * 4))
    return pl.pallas_call(
        kern,
        grid=(n,),
        in_specs=[
            pl.BlockSpec((1, ss, hs, ws, cin_p), lambda i: (i, 0, 0, 0, 0)),
            pl.BlockSpec((9, cin_p, cout_p), lambda i: (0, 0, 0)),
        ],
        out_specs=[
            pl.BlockSpec((ho * wo, cout_p), lambda i: (i, 0)),
            pl.BlockSpec((1, 1, cout_p), lambda i: (i, 0, 0)),
            pl.BlockSpec((1, 1, cout_p), lambda i: (i, 0, 0)),
        ],
        out_shape=[
            jax.ShapeDtypeStruct((rows, cout_p), jnp.float32),
            jax.ShapeDtypeStruct((n, 1, cout_p), jnp.float32),
            jax.ShapeDtypeStruct((n, 1, cout_p), jnp.float32),
        ],
        compiler_params=_compiler_params(),
        cost_estimate=cost,
    )(phases, w_mat)


def matmul_stats(x_rows, w_mat, *, n, ho, wo):
    rows, cin_p = x_rows.shape
    cout_p = w_mat.shape[-1]
    cost = pl.CostEstimate(
        flops=2 * rows * cin_p * cout_p, transcendentals=0,
        bytes_accessed=x_rows.size * 2 + w_mat.size * 2 + rows * cout_p * 4)
    return pl.pallas_call(
        _matmul_stats_kernel,
        grid=(n,),
        in_specs=[
            pl.BlockSpec((ho * wo, cin_p), lambda i: (i, 0)),
            pl.BlockSpec((cin_p, cout_p), lambda i: (0, 0)),
        ],
        out_specs=[
            pl.BlockSpec((ho * wo, cout_p), lambda i: (i, 0)),
            pl.BlockSpec((1, 1, cout_p), lambda i: (i, 0, 0)),
            pl.BlockSpec((1, 1, cout_p), lambda i: (i, 0, 0)),
        ],
        out_shape=[
            jax.ShapeDtypeStruct((rows, cout_p), jnp.float32),
            jax.ShapeDtypeStruct((n, 1, cout_p), jnp.float32),
            jax.ShapeDtypeStruct((n, 1, cout_p), jnp.float32),
        ],
        compiler_params=_compiler_params(),
        cost_estimate=cost,
    )(x_rows, w_mat)


def bn_relu_pad(acc, scale, shift, *, n, ho, wo):
    cp = acc.shape[-1]
    kern = functools.partial(_bn_relu_pad_kernel, ho=ho, wo=wo)
    return pl.pallas_call(
        kern,
        grid=(n,),
        in_specs=[
            pl.BlockSpec((ho * wo, cp), lambda i: (i, 0)),
            pl.BlockSpec((1, cp), lambda i: (0, 0)),
            pl.BlockSpec((1, cp), lambda i: (0, 0)),
        ],
        out_specs=pl.BlockSpec((1, 1, ho + 2, wo + 2, cp),
                               lambda i: (i, 0, 0, 0, 0)),
        out_shape=jax.ShapeDtypeStruct((n, 1, ho + 2, wo + 2, cp), jnp.bfloat16),
        compiler_params=_compiler_params(),
    )(acc, scale, shift)


def bn_add_relu(acc, short, scale, shift, sscale, sshift, *, n, ho, wo):
    cp = acc.shape[-1]
    return pl.pallas_call(
        _bn_add_relu_kernel,
        grid=(n,),
        in_specs=[
            pl.BlockSpec((ho * wo, cp), lambda i: (i, 0)),
            pl.BlockSpec((ho * wo, cp), lambda i: (i, 0)),
            pl.BlockSpec((1, cp), lambda i: (0, 0)),
            pl.BlockSpec((1, cp), lambda i: (0, 0)),
            pl.BlockSpec((1, cp), lambda i: (0, 0)),
            pl.BlockSpec((1, cp), lambda i: (0, 0)),
        ],
        out_specs=pl.BlockSpec((ho * wo, cp), lambda i: (i, 0)),
        out_shape=jax.ShapeDtypeStruct((n * ho * wo, cp), jnp.float32),
        compiler_params=_compiler_params(),
    )(acc, short, scale, shift, sscale, sshift)


# ------------------------------ JAX glue ----------------------------------- #

def _pad_channels(x, cp):
    c = x.shape[-1]
    if c == cp:
        return x
    return jnp.pad(x, [(0, 0)] * (x.ndim - 1) + [(0, cp - c)])


def _make_phases(x_nhwc, stride):
    """Spatial pad (3x3, pad=1) and split into stride^2 phase planes so the
    kernel's 9-tap gather needs only static contiguous slices.  bf16 output."""
    n, h, w, c = x_nhwc.shape
    xp = jnp.pad(x_nhwc, ((0, 0), (1, 1), (1, 1), (0, 0)))
    if stride == 1:
        return xp.astype(jnp.bfloat16)[:, None]              # (N,1,H+2,W+2,C)
    s = stride
    hp, wp = h + 2, w + 2
    hs, ws = -(-hp // s), -(-wp // s)
    xp = jnp.pad(xp, ((0, 0), (0, hs * s - hp), (0, ws * s - wp), (0, 0)))
    ph = xp.reshape(n, hs, s, ws, s, c).transpose(0, 2, 4, 1, 3, 5)
    return ph.reshape(n, s * s, hs, ws, c).astype(jnp.bfloat16)


def _w3x3_to_mat(w_oihw, cin_p, cout_p):
    cout, cin = w_oihw.shape[0], w_oihw.shape[1]
    w = jnp.transpose(w_oihw, (2, 3, 1, 0)).reshape(9, cin, cout)   # tap-major (dy,dx)
    w = jnp.pad(w, ((0, 0), (0, cin_p - cin), (0, cout_p - cout)))
    return w.astype(jnp.bfloat16)


def _w1x1_to_mat(w_oi11, cin_p, cout_p):
    cout, cin = w_oi11.shape[0], w_oi11.shape[1]
    w = jnp.transpose(w_oi11[:, :, 0, 0], (1, 0))
    w = jnp.pad(w, ((0, cin_p - cin), (0, cout_p - cout)))
    return w.astype(jnp.bfloat16)


def _bn_affine(psum, pssq, count, gamma, beta, cp):
    """Fold batch BN (biased batch stats, eps=1e-5) into per-channel scale/shift."""
    g = _pad_channels(gamma.reshape(1, -1).astype(jnp.float32), cp)
    b = _pad_channels(beta.reshape(1, -1).astype(jnp.float32), cp)
    mean = jnp.sum(psum, axis=0) / count                      # (1, cp)
    var = jnp.maximum(jnp.sum(pssq, axis=0) / count - mean * mean, 0.0)
    scale = g * jax.lax.rsqrt(var + _EPS)
    shift = b - mean * scale
    return scale, shift


def basic_block_forward(x_nchw, params, stride):
    n, in_planes, h, w = x_nchw.shape
    planes = params["w1"].shape[0]
    cin_p = _round_up(in_planes, _LANE)
    cp = _round_up(planes, _LANE)
    ho = (h + 2 - 3) // stride + 1
    wo = (w + 2 - 3) // stride + 1
    rows = n * ho * wo

    x_nhwc = _pad_channels(jnp.transpose(x_nchw, (0, 2, 3, 1)), cin_p)

    # conv1 -> bn1 -> relu  (epilogue emits conv2's padded bf16 input directly)
    w1 = _w3x3_to_mat(params["w1"] * params["mask1"], cin_p, cp)
    ph1 = _make_phases(x_nhwc, stride)
    acc1, s1, q1 = conv3x3_stats(ph1, w1, n=n, ho=ho, wo=wo, stride=stride)
    scale1, shift1 = _bn_affine(s1, q1, rows, params["g1"], params["b1"], cp)
    ph2 = bn_relu_pad(acc1, scale1, shift1, n=n, ho=ho, wo=wo)

    # conv2 -> bn2 (normalization deferred into the fused residual epilogue)
    w2 = _w3x3_to_mat(params["w2"] * params["mask2"], cp, cp)
    acc2, s2, q2 = conv3x3_stats(ph2, w2, n=n, ho=ho, wo=wo, stride=1)
    scale2, shift2 = _bn_affine(s2, q2, rows, params["g2"], params["b2"], cp)

    # shortcut branch
    if stride != 1 or in_planes != planes:
        ws_mat = _w1x1_to_mat(params["ws"] * params["mask_s"], cin_p, cp)
        xs = x_nhwc[:, ::stride, ::stride, :].reshape(rows, cin_p).astype(jnp.bfloat16)
        short, ss_, qs_ = matmul_stats(xs, ws_mat, n=n, ho=ho, wo=wo)
        sscale, sshift = _bn_affine(ss_, qs_, rows, params["gs"], params["bs"], cp)
    else:
        short = x_nhwc.reshape(rows, cp)
        sscale = _pad_channels(params["mask_s"].reshape(1, -1).astype(jnp.float32), cp)
        sshift = jnp.zeros((1, cp), jnp.float32)

    out = bn_add_relu(acc2, short, scale2, shift2, sscale, sshift, n=n, ho=ho, wo=wo)
    out = out.reshape(n, ho, wo, cp)[..., :planes]
    return jnp.transpose(out, (0, 3, 1, 2))


# --------------------------- reference (pure JAX) --------------------------- #

def _ref_bn(x, gamma, beta):
    mean = jnp.mean(x, axis=(0, 2, 3), keepdims=True)
    var = jnp.mean((x - mean) ** 2, axis=(0, 2, 3), keepdims=True)
    return ((x - mean) * jax.lax.rsqrt(var + _EPS)
            * gamma.reshape(1, -1, 1, 1) + beta.reshape(1, -1, 1, 1))


def _ref_conv(x, w, stride, padding):
    # mirrors the kernel's MXU precision choice: bf16 operands, f32 accumulation
    return jax.lax.conv_general_dilated(
        x.astype(jnp.bfloat16), w.astype(jnp.bfloat16),
        window_strides=(stride, stride),
        padding=((padding, padding), (padding, padding)),
        dimension_numbers=("NCHW", "OIHW", "NCHW"),
        preferred_element_type=jnp.float32)


def ref_forward(x, params, stride):
    in_planes = x.shape[1]
    planes = params["w1"].shape[0]
    out = _ref_conv(x, params["w1"] * params["mask1"], stride, 1)
    out = jax.nn.relu(_ref_bn(out, params["g1"], params["b1"]))
    out = _ref_conv(out, params["w2"] * params["mask2"], 1, 1)
    out = _ref_bn(out, params["g2"], params["b2"])
    if stride != 1 or in_planes != planes:
        sc = _ref_conv(x, params["ws"] * params["mask_s"], stride, 0)
        sc = _ref_bn(sc, params["gs"], params["bs"])
    else:
        sc = x * params["mask_s"].reshape(1, -1, 1, 1)
    return jax.nn.relu(out + sc)


# ------------------------------ param init --------------------------------- #

def init_params(key, in_planes, planes, stride):
    ks = jax.random.split(key, 8)
    p = {
        "w1": 0.2 * jax.random.normal(ks[0], (planes, in_planes, 3, 3), jnp.float32),
        "w2": 0.2 * jax.random.normal(ks[1], (planes, planes, 3, 3), jnp.float32),
        "g1": 1.0 + 0.1 * jax.random.normal(ks[2], (planes,), jnp.float32),
        "b1": 0.1 * jax.random.normal(ks[3], (planes,), jnp.float32),
        "g2": 1.0 + 0.1 * jax.random.normal(ks[4], (planes,), jnp.float32),
        "b2": 0.1 * jax.random.normal(ks[5], (planes,), jnp.float32),
        "mask1": jnp.ones((planes, in_planes, 3, 3), jnp.float32),
        "mask2": jnp.ones((planes, planes, 3, 3), jnp.float32),
    }
    if stride != 1 or in_planes != planes:
        p["ws"] = 0.2 * jax.random.normal(ks[6], (planes, in_planes, 1, 1), jnp.float32)
        p["gs"] = 1.0 + 0.1 * jax.random.normal(ks[7], (planes,), jnp.float32)
        p["bs"] = jnp.zeros((planes,), jnp.float32)
        p["mask_s"] = jnp.ones((planes, in_planes, 1, 1), jnp.float32)
    else:
        p["mask_s"] = jnp.ones((planes,), jnp.float32)
    return p


if __name__ == "__main__":
    key = jax.random.PRNGKey(0)
    kx1, kx2, kp1, kp2 = jax.random.split(key, 4)

    # Case 1: downsampling block (stride=2, in_planes != planes) -> option 'B' shortcut
    x1 = jax.random.normal(kx1, (2, 4, 16, 16), jnp.float32)
    params1 = init_params(kp1, 4, 8, 2)
    out1 = jax.block_until_ready(basic_block_forward(x1, params1, 2))
    ref1 = ref_forward(x1, params1, 2)
    assert out1.shape == (2, 8, 8, 8), out1.shape
    assert jnp.allclose(out1, ref1, atol=1e-2, rtol=1e-2), float(jnp.abs(out1 - ref1).max())

    # Case 2: identity block (stride=1, in_planes == planes) -> identity shortcut * ones-mask
    x2 = jax.random.normal(kx2, (2, 8, 8, 8), jnp.float32)
    params2 = init_params(kp2, 8, 8, 1)
    out2 = jax.block_until_ready(basic_block_forward(x2, params2, 1))
    ref2 = ref_forward(x2, params2, 1)
    assert out2.shape == (2, 8, 8, 8), out2.shape
    assert jnp.allclose(out2, ref2, atol=1e-2, rtol=1e-2), float(jnp.abs(out2 - ref2).max())

    print("KERNEL_OK")
</pallas_src>

<mosaic_0001>
module attributes {stable_mosaic.version = 11 : i64} {
  func.func @_conv3x3_stats_kernel(%arg0: i32, %arg1: memref<1x4x9x9x128xbf16, #tpu.memory_space<vmem>>, %arg2: memref<9x128x128xbf16, #tpu.memory_space<vmem>>, %arg3: memref<64x128xf32, #tpu.memory_space<vmem>>, %arg4: memref<1x1x128xf32, #tpu.memory_space<vmem>>, %arg5: memref<1x1x128xf32, #tpu.memory_space<vmem>>) attributes {dimension_semantics = [#tpu.dimension_semantics<parallel>], iteration_bounds = array<i64: 2>, scalar_prefetch = 0 : i64, scratch_operands = 0 : i64, tpu.core_type = #tpu.core_type<tc>, window_params = [{transform_indices = @transform_0, window_bounds = array<i64: 1, 4, 9, 9, 128>}, {pipeline_mode = #tpu.pipeline_mode<synchronous>, transform_indices = @transform_1, window_bounds = array<i64: 9, 128, 128>}, {transform_indices = @transform_2, window_bounds = array<i64: 64, 128>}, {transform_indices = @transform_3, window_bounds = array<i64: 1, 1, 128>}, {transform_indices = @transform_4, window_bounds = array<i64: 1, 1, 128>}]} {
    %cst = arith.constant 0.000000e+00 : f32
    %0 = vector.broadcast %cst : f32 to vector<64x128xf32>
    %c0 = arith.constant 0 : index
    %c0_0 = arith.constant 0 : index
    %1 = vector.load %arg3[%c0, %c0_0] : memref<64x128xf32, #tpu.memory_space<vmem>>, vector<64x128xf32>
    tpu.vector_store %arg3[%c0, %c0_0], %0 {strides = array<i32>} : memref<64x128xf32, #tpu.memory_space<vmem>>, vector<64x128xf32>,
    %c0_1 = arith.constant 0 : index
    %c0_2 = arith.constant 0 : index
    %c0_3 = arith.constant 0 : index
    %c0_4 = arith.constant 0 : index
    %c0_5 = arith.constant 0 : index
    %2 = vector.load %arg1[%c0_1, %c0_2, %c0_3, %c0_4, %c0_5] : memref<1x4x9x9x128xbf16, #tpu.memory_space<vmem>>, vector<1x1x8x8x128xbf16>
    %3 = vector.shape_cast %2 : vector<1x1x8x8x128xbf16> to vector<8x8x128xbf16>
    %4 = vector.shape_cast %3 : vector<8x8x128xbf16> to vector<64x128xbf16>
    %c0_6 = arith.constant 0 : index
    %c0_7 = arith.constant 0 : index
    %5 = vector.load %arg3[%c0_6, %c0_7] : memref<64x128xf32, #tpu.memory_space<vmem>>, vector<64x128xf32>
    %c0_8 = arith.constant 0 : index
    %c0_9 = arith.constant 0 : index
    %c0_10 = arith.constant 0 : index
    %6 = vector.load %arg2[%c0_8, %c0_9, %c0_10] : memref<9x128x128xbf16, #tpu.memory_space<vmem>>, vector<1x128x128xbf16>
    %7 = vector.shape_cast %6 : vector<1x128x128xbf16> to vector<128x128xbf16>
    %cst_11 = arith.constant dense<0.000000e+00> : vector<64x128xf32>
    %8 = tpu.matmul %4, %7, %cst_11 {dimension_numbers = #tpu.dot_dimension_numbers<[1], [0], [0], [1], [0, 0, 1, 1], [], []>} : vector<64x128xbf16>, vector<128x128xbf16>, vector<64x128xf32> -> vector<64x128xf32>
    %9 = arith.addf %5, %8 : vector<64x128xf32>
    %c0_12 = arith.constant 0 : index
    %c0_13 = arith.constant 0 : index
    %10 = vector.load %arg3[%c0_12, %c0_13] : memref<64x128xf32, #tpu.memory_space<vmem>>, vector<64x128xf32>
    tpu.vector_store %arg3[%c0_12, %c0_13], %9 {strides = array<i32>} : memref<64x128xf32, #tpu.memory_space<vmem>>, vector<64x128xf32>,
    %c0_14 = arith.constant 0 : index
    %c1 = arith.constant 1 : index
    %c0_15 = arith.constant 0 : index
    %c0_16 = arith.constant 0 : index
    %c0_17 = arith.constant 0 : index
    %11 = vector.load %arg1[%c0_14, %c1, %c0_15, %c0_16, %c0_17] : memref<1x4x9x9x128xbf16, #tpu.memory_space<vmem>>, vector<1x1x8x8x128xbf16>
    %12 = vector.shape_cast %11 : vector<1x1x8x8x128xbf16> to vector<8x8x128xbf16>
    %13 = vector.shape_cast %12 : vector<8x8x128xbf16> to vector<64x128xbf16>
    %c0_18 = arith.constant 0 : index
    %c0_19 = arith.constant 0 : index
    %14 = vector.load %arg3[%c0_18, %c0_19] : memref<64x128xf32, #tpu.memory_space<vmem>>, vector<64x128xf32>
    %c1_20 = arith.constant 1 : index
    %c0_21 = arith.constant 0 : index
    %c0_22 = arith.constant 0 : index
    %15 = vector.load %arg2[%c1_20, %c0_21, %c0_22] : memref<9x128x128xbf16, #tpu.memory_space<vmem>>, vector<1x128x128xbf16>
    %16 = vector.shape_cast %15 : vector<1x128x128xbf16> to vector<128x128xbf16>
    %cst_23 = arith.constant dense<0.000000e+00> : vector<64x128xf32>
    %17 = tpu.matmul %13, %16, %cst_23 {dimension_numbers = #tpu.dot_dimension_numbers<[1], [0], [0], [1], [0, 0, 1, 1], [], []>} : vector<64x128xbf16>, vector<128x128xbf16>, vector<64x128xf32> -> vector<64x128xf32>
    %18 = arith.addf %14, %17 : vector<64x128xf32>
    %c0_24 = arith.constant 0 : index
    %c0_25 = arith.constant 0 : index
    %19 = vector.load %arg3[%c0_24, %c0_25] : memref<64x128xf32, #tpu.memory_space<vmem>>, vector<64x128xf32>
    tpu.vector_store %arg3[%c0_24, %c0_25], %18 {strides = array<i32>} : memref<64x128xf32, #tpu.memory_space<vmem>>, vector<64x128xf32>,
    %c0_26 = arith.constant 0 : index
    %c0_27 = arith.constant 0 : index
    %c0_28 = arith.constant 0 : index
    %c1_29 = arith.constant 1 : index
    %c0_30 = arith.constant 0 : index
    %20 = vector.load %arg1[%c0_26, %c0_27, %c0_28, %c1_29, %c0_30] : memref<1x4x9x9x128xbf16, #tpu.memory_space<vmem>>, vector<1x1x8x8x128xbf16>
    %21 = vector.shape_cast %20 : vector<1x1x8x8x128xbf16> to vector<8x8x128xbf16>
    %22 = vector.shape_cast %21 : vector<8x8x128xbf16> to vector<64x128xbf16>
    %c0_31 = arith.constant 0 : index
    %c0_32 = arith.constant 0 : index
    %23 = vector.load %arg3[%c0_31, %c0_32] : memref<64x128xf32, #tpu.memory_space<vmem>>, vector<64x128xf32>
    %c2 = arith.constant 2 : index
    %c0_33 = arith.constant 0 : index
    %c0_34 = arith.constant 0 : index
    %24 = vector.load %arg2[%c2, %c0_33, %c0_34] : memref<9x128x128xbf16, #tpu.memory_space<vmem>>, vector<1x128x128xbf16>
    %25 = vector.shape_cast %24 : vector<1x128x128xbf16> to vector<128x128xbf16>
    %cst_35 = arith.constant dense<0.000000e+00> : vector<64x128xf32>
    %26 = tpu.matmul %22, %25, %cst_35 {dimension_numbers = #tpu.dot_dimension_numbers<[1], [0], [0], [1], [0, 0, 1, 1], [], []>} : vector<64x128xbf16>, vector<128x128xbf16>, vector<64x128xf32> -> vector<64x128xf32>
    %27 = arith.addf %23, %26 : vector<64x128xf32>
    %c0_36 = arith.constant 0 : index
    %c0_37 = arith.constant 0 : index
    %28 = vector.load %arg3[%c0_36, %c0_37] : memref<64x128xf32, #tpu.memory_space<vmem>>, vector<64x128xf32>
    tpu.vector_store %arg3[%c0_36, %c0_37], %27 {strides = array<i32>} : memref<64x128xf32, #tpu.memory_space<vmem>>, vector<64x128xf32>,
    %c0_38 = arith.constant 0 : index
    %c2_39 = arith.constant 2 : index
    %c0_40 = arith.constant 0 : index
    %c0_41 = arith.constant 0 : index
    %c0_42 = arith.constant 0 : index
    %29 = vector.load %arg1[%c0_38, %c2_39, %c0_40, %c0_41, %c0_42] : memref<1x4x9x9x128xbf16, #tpu.memory_space<vmem>>, vector<1x1x8x8x128xbf16>
    %30 = vector.shape_cast %29 : vector<1x1x8x8x128xbf16> to vector<8x8x128xbf16>
    %31 = vector.shape_cast %30 : vector<8x8x128xbf16> to vector<64x128xbf16>
    %c0_43 = arith.constant 0 : index
    %c0_44 = arith.constant 0 : index
    %32 = vector.load %arg3[%c0_43, %c0_44] : memref<64x128xf32, #tpu.memory_space<vmem>>, vector<64x128xf32>
    %c3 = arith.constant 3 : index
    %c0_45 = arith.constant 0 : index
    %c0_46 = arith.constant 0 : index
    %33 = vector.load %arg2[%c3, %c0_45, %c0_46] : memref<9x128x128xbf16, #tpu.memory_space<vmem>>, vector<1x128x128xbf16>
    %34 = vector.shape_cast %33 : vector<1x128x128xbf16> to vector<128x128xbf16>
    %cst_47 = arith.constant dense<0.000000e+00> : vector<64x128xf32>
    %35 = tpu.matmul %31, %34, %cst_47 {dimension_numbers = #tpu.dot_dimension_numbers<[1], [0], [0], [1], [0, 0, 1, 1], [], []>} : vector<64x128xbf16>, vector<128x128xbf16>, vector<64x128xf32> -> vector<64x128xf32>
    %36 = arith.addf %32, %35 : vector<64x128xf32>
    %c0_48 = arith.constant 0 : index
    %c0_49 = arith.constant 0 : index
    %37 = vector.load %arg3[%c0_48, %c0_49] : memref<64x128xf32, #tpu.memory_space<vmem>>, vector<64x128xf32>
    tpu.vector_store %arg3[%c0_48, %c0_49], %36 {strides = array<i32>} : memref<64x128xf32, #tpu.memory_space<vmem>>, vector<64x128xf32>,
    %c0_50 = arith.constant 0 : index
    %c3_51 = arith.constant 3 : index
    %c0_52 = arith.constant 0 : index
    %c0_53 = arith.constant 0 : index
    %c0_54 = arith.constant 0 : index
    %38 = vector.load %arg1[%c0_50, %c3_51, %c0_52, %c0_53, %c0_54] : memref<1x4x9x9x128xbf16, #tpu.memory_space<vmem>>, vector<1x1x8x8x128xbf16>
    %39 = vector.shape_cast %38 : vector<1x1x8x8x128xbf16> to vector<8x8x128xbf16>
    %40 = vector.shape_cast %39 : vector<8x8x128xbf16> to vector<64x128xbf16>
    %c0_55 = arith.constant 0 : index
    %c0_56 = arith.constant 0 : index
    %41 = vector.load %arg3[%c0_55, %c0_56] : memref<64x128xf32, #tpu.memory_space<vmem>>, vector<64x128xf32>
    %c4 = arith.constant 4 : index
    %c0_57 = arith.constant 0 : index
    %c0_58 = arith.constant 0 : index
    %42 = vector.load %arg2[%c4, %c0_57, %c0_58] : memref<9x128x128xbf16, #tpu.memory_space<vmem>>, vector<1x128x128xbf16>
    %43 = vector.shape_cast %42 : vector<1x128x128xbf16> to vector<128x128xbf16>
    %cst_59 = arith.constant dense<0.000000e+00> : vector<64x128xf32>
    %44 = tpu.matmul %40, %43, %cst_59 {dimension_numbers = #tpu.dot_dimension_numbers<[1], [0], [0], [1], [0, 0, 1, 1], [], []>} : vector<64x128xbf16>, vector<128x128xbf16>, vector<64x128xf32> -> vector<64x128xf32>
    %45 = arith.addf %41, %44 : vector<64x128xf32>
    %c0_60 = arith.constant 0 : index
    %c0_61 = arith.constant 0 : index
    %46 = vector.load %arg3[%c0_60, %c0_61] : memref<64x128xf32, #tpu.memory_space<vmem>>, vector<64x128xf32>
    tpu.vector_store %arg3[%c0_60, %c0_61], %45 {strides = array<i32>} : memref<64x128xf32, #tpu.memory_space<vmem>>, vector<64x128xf32>,
    %c0_62 = arith.constant 0 : index
    %c2_63 = arith.constant 2 : index
    %c0_64 = arith.constant 0 : index
    %c1_65 = arith.constant 1 : index
    %c0_66 = arith.constant 0 : index
    %47 = vector.load %arg1[%c0_62, %c2_63, %c0_64, %c1_65, %c0_66] : memref<1x4x9x9x128xbf16, #tpu.memory_space<vmem>>, vector<1x1x8x8x128xbf16>
    %48 = vector.shape_cast %47 : vector<1x1x8x8x128xbf16> to vector<8x8x128xbf16>
    %49 = vector.shape_cast %48 : vector<8x8x128xbf16> to vector<64x128xbf16>
    %c0_67 = arith.constant 0 : index
    %c0_68 = arith.constant 0 : index
    %50 = vector.load %arg3[%c0_67, %c0_68] : memref<64x128xf32, #tpu.memory_space<vmem>>, vector<64x128xf32>
    %c5 = arith.constant 5 : index
    %c0_69 = arith.constant 0 : index
    %c0_70 = arith.constant 0 : index
    %51 = vector.load %arg2[%c5, %c0_69, %c0_70] : memref<9x128x128xbf16, #tpu.memory_space<vmem>>, vector<1x128x128xbf16>
    %52 = vector.shape_cast %51 : vector<1x128x128xbf16> to vector<128x128xbf16>
    %cst_71 = arith.constant dense<0.000000e+00> : vector<64x128xf32>
    %53 = tpu.matmul %49, %52, %cst_71 {dimension_numbers = #tpu.dot_dimension_numbers<[1], [0], [0], [1], [0, 0, 1, 1], [], []>} : vector<64x128xbf16>, vector<128x128xbf16>, vector<64x128xf32> -> vector<64x128xf32>
    %54 = arith.addf %50, %53 : vector<64x128xf32>
    %c0_72 = arith.constant 0 : index
    %c0_73 = arith.constant 0 : index
    %55 = vector.load %arg3[%c0_72, %c0_73] : memref<64x128xf32, #tpu.memory_space<vmem>>, vector<64x128xf32>
    tpu.vector_store %arg3[%c0_72, %c0_73], %54 {strides = array<i32>} : memref<64x128xf32, #tpu.memory_space<vmem>>, vector<64x128xf32>,
    %c0_74 = arith.constant 0 : index
    %c0_75 = arith.constant 0 : index
    %c1_76 = arith.constant 1 : index
    %c0_77 = arith.constant 0 : index
    %c0_78 = arith.constant 0 : index
    %56 = vector.load %arg1[%c0_74, %c0_75, %c1_76, %c0_77, %c0_78] : memref<1x4x9x9x128xbf16, #tpu.memory_space<vmem>>, vector<1x1x8x8x128xbf16>
    %57 = vector.shape_cast %56 : vector<1x1x8x8x128xbf16> to vector<8x8x128xbf16>
    %58 = vector.shape_cast %57 : vector<8x8x128xbf16> to vector<64x128xbf16>
    %c0_79 = arith.constant 0 : index
    %c0_80 = arith.constant 0 : index
    %59 = vector.load %arg3[%c0_79, %c0_80] : memref<64x128xf32, #tpu.memory_space<vmem>>, vector<64x128xf32>
    %c6 = arith.constant 6 : index
    %c0_81 = arith.constant 0 : index
    %c0_82 = arith.constant 0 : index
    %60 = vector.load %arg2[%c6, %c0_81, %c0_82] : memref<9x128x128xbf16, #tpu.memory_space<vmem>>, vector<1x128x128xbf16>
    %61 = vector.shape_cast %60 : vector<1x128x128xbf16> to vector<128x128xbf16>
    %cst_83 = arith.constant dense<0.000000e+00> : vector<64x128xf32>
    %62 = tpu.matmul %58, %61, %cst_83 {dimension_numbers = #tpu.dot_dimension_numbers<[1], [0], [0], [1], [0, 0, 1, 1], [], []>} : vector<64x128xbf16>, vector<128x128xbf16>, vector<64x128xf32> -> vector<64x128xf32>
    %63 = arith.addf %59, %62 : vector<64x128xf32>
    %c0_84 = arith.constant 0 : index
    %c0_85 = arith.constant 0 : index
    %64 = vector.load %arg3[%c0_84, %c0_85] : memref<64x128xf32, #tpu.memory_space<vmem>>, vector<64x128xf32>
    tpu.vector_store %arg3[%c0_84, %c0_85], %63 {strides = array<i32>} : memref<64x128xf32, #tpu.memory_space<vmem>>, vector<64x128xf32>,
    %c0_86 = arith.constant 0 : index
    %c1_87 = arith.constant 1 : index
    %c1_88 = arith.constant 1 : index
    %c0_89 = arith.constant 0 : index
    %c0_90 = arith.constant 0 : index
    %65 = vector.load %arg1[%c0_86, %c1_87, %c1_88, %c0_89, %c0_90] : memref<1x4x9x9x128xbf16, #tpu.memory_space<vmem>>, vector<1x1x8x8x128xbf16>
    %66 = vector.shape_cast %65 : vector<1x1x8x8x128xbf16> to vector<8x8x128xbf16>
    %67 = vector.shape_cast %66 : vector<8x8x128xbf16> to vector<64x128xbf16>
    %c0_91 = arith.constant 0 : index
    %c0_92 = arith.constant 0 : index
    %68 = vector.load %arg3[%c0_91, %c0_92] : memref<64x128xf32, #tpu.memory_space<vmem>>, vector<64x128xf32>
    %c7 = arith.constant 7 : index
    %c0_93 = arith.constant 0 : index
    %c0_94 = arith.constant 0 : index
    %69 = vector.load %arg2[%c7, %c0_93, %c0_94] : memref<9x128x128xbf16, #tpu.memory_space<vmem>>, vector<1x128x128xbf16>
    %70 = vector.shape_cast %69 : vector<1x128x128xbf16> to vector<128x128xbf16>
    %cst_95 = arith.constant dense<0.000000e+00> : vector<64x128xf32>
    %71 = tpu.matmul %67, %70, %cst_95 {dimension_numbers = #tpu.dot_dimension_numbers<[1], [0], [0], [1], [0, 0, 1, 1], [], []>} : vector<64x128xbf16>, vector<128x128xbf16>, vector<64x128xf32> -> vector<64x128xf32>
    %72 = arith.addf %68, %71 : vector<64x128xf32>
    %c0_96 = arith.constant 0 : index
    %c0_97 = arith.constant 0 : index
    %73 = vector.load %arg3[%c0_96, %c0_97] : memref<64x128xf32, #tpu.memory_space<vmem>>, vector<64x128xf32>
    tpu.vector_store %arg3[%c0_96, %c0_97], %72 {strides = array<i32>} : memref<64x128xf32, #tpu.memory_space<vmem>>, vector<64x128xf32>,
    %c0_98 = arith.constant 0 : index
    %c0_99 = arith.constant 0 : index
    %c1_100 = arith.constant 1 : index
    %c1_101 = arith.constant 1 : index
    %c0_102 = arith.constant 0 : index
    %74 = vector.load %arg1[%c0_98, %c0_99, %c1_100, %c1_101, %c0_102] : memref<1x4x9x9x128xbf16, #tpu.memory_space<vmem>>, vector<1x1x8x8x128xbf16>
    %75 = vector.shape_cast %74 : vector<1x1x8x8x128xbf16> to vector<8x8x128xbf16>
    %76 = vector.shape_cast %75 : vector<8x8x128xbf16> to vector<64x128xbf16>
    %c0_103 = arith.constant 0 : index
    %c0_104 = arith.constant 0 : index
    %77 = vector.load %arg3[%c0_103, %c0_104] : memref<64x128xf32, #tpu.memory_space<vmem>>, vector<64x128xf32>
    %c8 = arith.constant 8 : index
    %c0_105 = arith.constant 0 : index
    %c0_106 = arith.constant 0 : index
    %78 = vector.load %arg2[%c8, %c0_105, %c0_106] : memref<9x128x128xbf16, #tpu.memory_space<vmem>>, vector<1x128x128xbf16>
    %79 = vector.shape_cast %78 : vector<1x128x128xbf16> to vector<128x128xbf16>
    %cst_107 = arith.constant dense<0.000000e+00> : vector<64x128xf32>
    %80 = tpu.matmul %76, %79, %cst_107 {dimension_numbers = #tpu.dot_dimension_numbers<[1], [0], [0], [1], [0, 0, 1, 1], [], []>} : vector<64x128xbf16>, vector<128x128xbf16>, vector<64x128xf32> -> vector<64x128xf32>
    %81 = arith.addf %77, %80 : vector<64x128xf32>
    %c0_108 = arith.constant 0 : index
    %c0_109 = arith.constant 0 : index
    %82 = vector.load %arg3[%c0_108, %c0_109] : memref<64x128xf32, #tpu.memory_space<vmem>>, vector<64x128xf32>
    tpu.vector_store %arg3[%c0_108, %c0_109], %81 {strides = array<i32>} : memref<64x128xf32, #tpu.memory_space<vmem>>, vector<64x128xf32>,
    %c0_110 = arith.constant 0 : index
    %c0_111 = arith.constant 0 : index
    %83 = vector.load %arg3[%c0_110, %c0_111] : memref<64x128xf32, #tpu.memory_space<vmem>>, vector<64x128xf32>
    %cst_112 = arith.constant dense<0.000000e+00> : vector<128xf32>
    %84 = vector.multi_reduction <add>, %83, %cst_112 [0] : vector<64x128xf32> to vector<128xf32>
    %85 = vector.shape_cast %84 : vector<128xf32> to vector<1x128xf32>
    %c0_113 = arith.constant 0 : index
    %c0_114 = arith.constant 0 : index
    %c0_115 = arith.constant 0 : index
    %86 = vector.load %arg4[%c0_113, %c0_114, %c0_115] : memref<1x1x128xf32, #tpu.memory_space<vmem>>, vector<1x1x128xf32>
    %87 = vector.shape_cast %86 : vector<1x1x128xf32> to vector<1x128xf32>
    %88 = vector.shape_cast %85 : vector<1x128xf32> to vector<1x1x128xf32>
    tpu.vector_store %arg4[%c0_113, %c0_114, %c0_115], %88 {strides = array<i32>} : memref<1x1x128xf32, #tpu.memory_space<vmem>>, vector<1x1x128xf32>,
    %89 = arith.mulf %83, %83 : vector<64x128xf32>
    %cst_116 = arith.constant dense<0.000000e+00> : vector<128xf32>
    %90 = vector.multi_reduction <add>, %89, %cst_116 [0] : vector<64x128xf32> to vector<128xf32>
    %91 = vector.shape_cast %90 : vector<128xf32> to vector<1x128xf32>
    %c0_117 = arith.constant 0 : index
    %c0_118 = arith.constant 0 : index
    %c0_119 = arith.constant 0 : index
    %92 = vector.load %arg5[%c0_117, %c0_118, %c0_119] : memref<1x1x128xf32, #tpu.memory_space<vmem>>, vector<1x1x128xf32>
    %93 = vector.shape_cast %92 : vector<1x1x128xf32> to vector<1x128xf32>
    %94 = vector.shape_cast %91 : vector<1x128xf32> to vector<1x1x128xf32>
    tpu.vector_store %arg5[%c0_117, %c0_118, %c0_119], %94 {strides = array<i32>} : memref<1x1x128xf32, #tpu.memory_space<vmem>>, vector<1x1x128xf32>,
    return
  }
  func.func @transform_0(%arg0: i32) -> (i32, i32, i32, i32, i32) {
    %c0_i32 = arith.constant 0 : i32
    %c0_i32_0 = arith.constant 0 : i32
    %c0_i32_1 = arith.constant 0 : i32
    %c0_i32_2 = arith.constant 0 : i32
    %c0_i32_3 = arith.constant 0 : i32
    return %arg0, %c0_i32, %c0_i32_0, %c0_i32_1, %c0_i32_2 : i32, i32, i32, i32, i32
  }
  func.func @transform_1(%arg0: i32) -> (i32, i32, i32) {
    %c0_i32 = arith.constant 0 : i32
    %c0_i32_0 = arith.constant 0 : i32
    %c0_i32_1 = arith.constant 0 : i32
    %c0_i32_2 = arith.constant 0 : i32
    return %c0_i32, %c0_i32_0, %c0_i32_1 : i32, i32, i32
  }
  func.func @transform_2(%arg0: i32) -> (i32, i32) {
    %c0_i32 = arith.constant 0 : i32
    %c0_i32_0 = arith.constant 0 : i32
    return %arg0, %c0_i32 : i32, i32
  }
  func.func @transform_3(%arg0: i32) -> (i32, i32, i32) {
    %c0_i32 = arith.constant 0 : i32
    %c0_i32_0 = arith.constant 0 : i32
    %c0_i32_1 = arith.constant 0 : i32
    return %arg0, %c0_i32, %c0_i32_0 : i32, i32, i32
  }
  func.func @transform_4(%arg0: i32) -> (i32, i32, i32) {
    %c0_i32 = arith.constant 0 : i32
    %c0_i32_0 = arith.constant 0 : i32
    %c0_i32_1 = arith.constant 0 : i32
    return %arg0, %c0_i32, %c0_i32_0 : i32, i32, i32
  }
}

</mosaic_0001>

<llo_original>
// kernel: tpu_custom_call.1
$region0: #{tpu_custom_call.1}
  #allocation0 [shape = 'u32[]', space=smem, size = 0x4, offset = 0x4, fixed_abs, tag = 'smem constant byte address 0x4 - core index']
  #allocation1 [shape = 'u32[144,128]{1,0:T(1,128)}', space=vmem, size = 0x12000, scoped, tag = 'internal scratch']
  %s0 = inlined_call_operand.vmem [shape: bf16[2,4,9,9,128], index: 0, kind: input, shape index: {}]
  %s1 = inlined_call_operand.vmem [shape: bf16[9,128,128], index: 1, kind: input, shape index: {}]
  %s2 = inlined_call_operand.hbm [shape: f32[128,128], index: 2, kind: output, shape index: {0}]
  %s3 = inlined_call_operand.hbm [shape: f32[2,1,128], index: 3, kind: output, shape index: {1}]
  %s4 = inlined_call_operand.hbm [shape: f32[2,1,128], index: 4, kind: output, shape index: {2}]
  %5 = xla_tuple %s2, %s3, %s4
  %s6 = sld [smem:[#allocation0]]
  $region57: #{tpu_custom_call.1} parent=0
    _
  %s8 = ssub.s32 1, %s6
  %s9 = scalar_select 0, %s8, %s6
  $region1: #{tpu_custom_call.1} parent=0
    #allocation2 [shape = 'u8[65536]{0}', space=vmem, size = 0x10000, scoped, tag = 'output window, operand 0']
    #allocation3 [shape = 's32[2]{0}', space=sflag, size = 0x8, scoped, tag = 'scoped memory for tpu_custom_call.1']
    #allocation4 [shape = 'u8[1024]{0}', space=vmem, size = 0x400, scoped, tag = 'output window, operand 1']
    #allocation5 [shape = 's32[2]{0}', space=sflag, size = 0x8, scoped, tag = 'scoped memory for tpu_custom_call.1']
    #allocation6 [shape = 'u8[1024]{0}', space=vmem, size = 0x400, scoped, tag = 'output window, operand 2']
    %10 = vsyncpa [#allocation3], 0
    %s11 = scalar_lea.sflag [#allocation3], 1
    %12 = vsyncpa %s11, 0
    %13 = vsyncpa [#allocation5], 0
    %s14 = scalar_lea.sflag [#allocation5], 1
    %15 = vsyncpa %s14, 0
    loop: start=0, step=1, limit=4
    $region2: #{tpu_custom_call.1} parent=1 // loop_pre_header
      _
    $region3: #{tpu_custom_call.1} parent=1 // loop_header
      %s17 = sphi 0, %s21
      %p18 = scmp.ge.s32.totalorder %s17, 4
      %s27 = sphi 0, %s29
      %s30 = sphi 0, %s27
      %s31 = sphi 0, %s30
      %s47 = sphi 0, %s31
      %s51 = sphi 0, %s51
      %s53 = sphi 0, %s51
      %s54 = sphi 0, %s53
      %s68 = sphi 0, %s54
      %s74 = sphi 0, %s76
      %s77 = sphi 0, %s74
      %s78 = sphi 0, %s77
      %s94 = sphi 0, %s78
      %s100 = sphi 0, %s102
      %s103 = sphi 0, %s100
      %s104 = sphi 0, %s103
      %s120 = sphi 0, %s104
      %s126 = sphi 0, %s128
      %s129 = sphi 0, %s126
      %s130 = sphi 0, %s129
      %s146 = sphi 0, %s130
    $region4: #{tpu_custom_call.1} parent=1 // loop_header_branch
      %20 = sbr.rel (%p18) target = $region8
    $region5: #{tpu_custom_call.1} parent=1 // loop_body
      %s22 = ssub.s32 %s17, 1
      %s23 = ssub.s32 %s17, 2
      %s24 = sadd.s32 %s17, 1
      %s25 = ssub.s32 %s17, %s24
      %p26 = scmp.eq.s32.totalorder %s25, 0
      %s28 = sadd.s32 %s27, 1
      %s29 = scalar_select %p26, %s27, %s28
      %p32 = pneg %p26
      %p33 = scmp.eq.s32.totalorder %s17, 1
      %p34 = por %p32, %p33
      %p35 = scmp.ne.s32.totalorder %s27, %s30
      %p36 = scmp.eq.s32.totalorder %s17, 0
      %p37 = por %p35, %p36
      %p38 = scmp.ne.s32.totalorder %s27, %s30
      %p39 = scmp.eq.s32.totalorder %s22, 1
      %p40 = por %p38, %p39
      %p41 = scmp.ne.s32.totalorder %s30, %s31
      %p42 = scmp.eq.s32.totalorder %s22, 0
      %p43 = por %p41, %p42
      %p44 = scmp.ne.s32.totalorder %s30, %s31
      %p45 = scmp.eq.s32.totalorder %s23, 1
      %p46 = por %p44, %p45
      %p48 = scmp.ne.s32.totalorder %s31, %s47
      %p49 = scmp.eq.s32.totalorder %s23, 0
      %p50 = por %p48, %p49
      %s52 = sadd.s32 %s51, 1
      %p55 = scmp.eq.s32.totalorder %s17, 1
      %p56 = scmp.ne.s32.totalorder %s51, %s53
      %p57 = scmp.eq.s32.totalorder %s17, 0
      %p58 = por %p56, %p57
      %p59 = scmp.ne.s32.totalorder %s51, %s53
      %p60 = scmp.eq.s32.totalorder %s22, 1
      %p61 = por %p59, %p60
      %p62 = scmp.ne.s32.totalorder %s53, %s54
      %p63 = scmp.eq.s32.totalorder %s22, 0
      %p64 = por %p62, %p63
      %p65 = scmp.ne.s32.totalorder %s53, %s54
      %p66 = scmp.eq.s32.totalorder %s23, 1
      %p67 = por %p65, %p66
      %p69 = scmp.ne.s32.totalorder %s54, %s68
      %p70 = scmp.eq.s32.totalorder %s23, 0
      %p71 = por %p69, %p70
      %s72 = ssub.s32 %s17, %s24
      %p73 = scmp.eq.s32.totalorder %s72, 0
      %s75 = sadd.s32 %s74, 1
      %s76 = scalar_select %p73, %s74, %s75
      %p79 = pneg %p73
      %p80 = scmp.eq.s32.totalorder %s17, 1
      %p81 = por %p79, %p80
      %p82 = scmp.ne.s32.totalorder %s74, %s77
      %p83 = scmp.eq.s32.totalorder %s17, 0
      %p84 = por %p82, %p83
      %p85 = scmp.ne.s32.totalorder %s74, %s77
      %p86 = scmp.eq.s32.totalorder %s22, 1
      %p87 = por %p85, %p86
      %p88 = scmp.ne.s32.totalorder %s77, %s78
      %p89 = scmp.eq.s32.totalorder %s22, 0
      %p90 = por %p88, %p89
      %p91 = scmp.ne.s32.totalorder %s77, %s78
      %p92 = scmp.eq.s32.totalorder %s23, 1
      %p93 = por %p91, %p92
      %p95 = scmp.ne.s32.totalorder %s78, %s94
      %p96 = scmp.eq.s32.totalorder %s23, 0
      %p97 = por %p95, %p96
      %s98 = ssub.s32 %s17, %s24
      %p99 = scmp.eq.s32.totalorder %s98, 0
      %s101 = sadd.s32 %s100, 1
      %s102 = scalar_select %p99, %s100, %s101
      %p105 = pneg %p99
      %p106 = scmp.eq.s32.totalorder %s17, 1
      %p107 = por %p105, %p106
      %p108 = scmp.ne.s32.totalorder %s100, %s103
      %p109 = scmp.eq.s32.totalorder %s17, 0
      %p110 = por %p108, %p109
      %p111 = scmp.ne.s32.totalorder %s100, %s103
      %p112 = scmp.eq.s32.totalorder %s22, 1
      %p113 = por %p111, %p112
      %p114 = scmp.ne.s32.totalorder %s103, %s104
      %p115 = scmp.eq.s32.totalorder %s22, 0
      %p116 = por %p114, %p115
      %p117 = scmp.ne.s32.totalorder %s103, %s104
      %p118 = scmp.eq.s32.totalorder %s23, 1
      %p119 = por %p117, %p118
      %p121 = scmp.ne.s32.totalorder %s104, %s120
      %p122 = scmp.eq.s32.totalorder %s23, 0
      %p123 = por %p121, %p122
      %s124 = ssub.s32 %s17, %s24
      %p125 = scmp.eq.s32.totalorder %s124, 0
      %s127 = sadd.s32 %s126, 1
      %s128 = scalar_select %p125, %s126, %s127
      %p131 = pneg %p125
      %p132 = scmp.eq.s32.totalorder %s17, 1
      %p133 = por %p131, %p132
      %p134 = scmp.ne.s32.totalorder %s126, %s129
      %p135 = scmp.eq.s32.totalorder %s17, 0
      %p136 = por %p134, %p135
      %p137 = scmp.ne.s32.totalorder %s126, %s129
      %p138 = scmp.eq.s32.totalorder %s22, 1
      %p139 = por %p137, %p138
      %p140 = scmp.ne.s32.totalorder %s129, %s130
      %p141 = scmp.eq.s32.totalorder %s22, 0
      %p142 = por %p140, %p141
      %p143 = scmp.ne.s32.totalorder %s129, %s130
      %p144 = scmp.eq.s32.totalorder %s23, 1
      %p145 = por %p143, %p144
      %p147 = scmp.ne.s32.totalorder %s130, %s146
      %p148 = scmp.eq.s32.totalorder %s23, 0
      %p149 = por %p147, %p148
      %p150 = scmp.le.s32.totalorder 1, %s17
      %p151 = scmp.lt.s32.totalorder %s17, 3
      %p152 = pnand %p150, %p151
      %p153 = pneg %p152
      // Predicated region
      $region9: #{tpu_custom_call.1} parent=5 // pred_check
        _
      $region10: #{tpu_custom_call.1} parent=5 // pred_check_branch
        %155 = sbr.rel (%p152) target = $region12
      $region11: #{tpu_custom_call.1} parent=5 // pred_region
        %s156 = ssub.s32 %s17, 1
        // Predicated region
        $region13: #{tpu_custom_call.1} parent=11 // pred_check
          %p157 = pneg %p64
        $region14: #{tpu_custom_call.1} parent=11 // pred_check_branch
          %159 = sbr.rel (%p157) target = $region16
        $region15: #{tpu_custom_call.1} parent=11 // pred_region
          _
        $region16: #{tpu_custom_call.1} parent=11 // pred_fallthru
          _
      $region12: #{tpu_custom_call.1} parent=5 // pred_fallthru
        _
      %p160 = scmp.lt.s32.totalorder %s17, 2
      // Predicated region
      $region17: #{tpu_custom_call.1} parent=5 // pred_check
        %p161 = pneg %p160
      $region18: #{tpu_custom_call.1} parent=5 // pred_check_branch
        %163 = sbr.rel (%p161) target = $region20
      $region19: #{tpu_custom_call.1} parent=5 // pred_region
        // Predicated region
        $region21: #{tpu_custom_call.1} parent=19 // pred_check
          %p164 = pneg %p37
        $region22: #{tpu_custom_call.1} parent=19 // pred_check_branch
          %166 = sbr.rel (%p164) target = $region24
        $region23: #{tpu_custom_call.1} parent=19 // pred_region
          %p167 = scmp.lt.s32.totalorder %s17, 1
          %s168 = scalar_select %p167, %s17, 1
          %s169 = smul.addr %s168, 72
          %s170 = smul.addr %s169, 4
          %s171 = scalar_lea.vmem %s0, %s170
        $region24: #{tpu_custom_call.1} parent=19 // pred_fallthru
          _
      $region20: #{tpu_custom_call.1} parent=5 // pred_fallthru
        _
      %p172 = scmp.le.s32.totalorder 1, %s17
      %p173 = scmp.lt.s32.totalorder %s17, 3
      %p174 = pnand %p172, %p173
      %p175 = pneg %p174
      // Predicated region
      $region25: #{tpu_custom_call.1} parent=5 // pred_check
        _
      $region26: #{tpu_custom_call.1} parent=5 // pred_check_branch
        %177 = sbr.rel (%p174) target = $region28
      $region27: #{tpu_custom_call.1} parent=5 // pred_region
        %s178 = ssub.s32 %s17, 1
        %p179 = scmp.lt.s32.totalorder %s22, 1
        %s180 = scalar_select %p179, %s22, 1
        %s181 = smul.addr %s180, 72
        %s182 = smul.addr %s181, 4
        %s183 = scalar_lea.vmem %s0, %s182
        %p184 = pneg %p43
        %p185 = pneg %p40
        %p186 = pneg %p64
        %p187 = pneg %p61
        %p188 = pneg %p90
        %p189 = pneg %p87
        %s190 = sand.u32 %s77, 1
        %s191 = scalar_lea.sflag [#allocation3], %s190
        %s192 = sand.u32 %s77, 1
        %s193 = smul.addr %s192, 64
        %s194 = scalar_lea.vmem [#allocation2], %s193
        %p195 = pneg %p116
        %p196 = pneg %p113
        %s197 = sand.u32 %s22, 1
        %s198 = scalar_lea.sflag [#allocation5], %s197
        %s199 = sand.u32 %s103, 1
        %s200 = scalar_lea.vmem [#allocation4], %s199
        %p201 = pneg %p142
        %p202 = pneg %p139
        %s203 = sand.u32 %s22, 1
        %s204 = scalar_lea.sflag [#allocation5], %s203
        %s205 = sand.u32 %s129, 1
        %s206 = scalar_lea.vmem [#allocation6], %s205
        %p207 = scmp.lt.s32.totalorder %s22, 1
        %s208 = scalar_select %p207, %s22, 1
        %s209 = smul.addr %s208, 72
        %s210 = smul.addr %s209, 4
        %s211 = scalar_lea.vmem %s0, %s210
        %s212 = smul.u32 8, %s22
        %214 = vst [vmem:[%s194] sm:$0xff] 0.0
        %215 = vst [vmem:[%s194 + $0x8] sm:$0xff] 0.0
        %216 = vst [vmem:[%s194 + $0x10] sm:$0xff] 0.0
        %217 = vst [vmem:[%s194 + $0x18] sm:$0xff] 0.0
        %218 = vst [vmem:[%s194 + $0x20] sm:$0xff] 0.0
        %219 = vst [vmem:[%s194 + $0x28] sm:$0xff] 0.0
        %220 = vst [vmem:[%s194 + $0x30] sm:$0xff] 0.0
        %221 = vst [vmem:[%s194 + $0x38] sm:$0xff] 0.0
        %v222 = vld [vmem:[%s211] sm:$0xf]
        %v223 = vld [vmem:[%s211 + $0x8] sm:$0xf]
        %v224 = vld [vmem:[%s211 + $0x10] sm:$0xf]
        %v225 = vld [vmem:[%s211 + $0x18] sm:$0xf]
        %v226 = vld [vmem:[%s211 + $0x20] sm:$0xf]
        %v227 = vld [vmem:[%s211 + $0x28] sm:$0xf]
        %v228 = vld [vmem:[%s211 + $0x30] sm:$0xf]
        %v229 = vld [vmem:[%s211 + $0x38] sm:$0xf]
        %v230 = vld [vmem:[%s194] sm:$0xff]
        %v231 = vld [vmem:[%s194 + $0x8] sm:$0xff]
        %v232 = vld [vmem:[%s194 + $0x10] sm:$0xff]
        %v233 = vld [vmem:[%s194 + $0x18] sm:$0xff]
        %v234 = vld [vmem:[%s194 + $0x20] sm:$0xff]
        %v235 = vld [vmem:[%s194 + $0x28] sm:$0xff]
        %v236 = vld [vmem:[%s194 + $0x30] sm:$0xff]
        %v237 = vld [vmem:[%s194 + $0x38] sm:$0xff]
        %v238 = vld [vmem:[%s1] sm:$0xf]
        %v239 = vld [vmem:[%s1 + $0x4] sm:$0xf]
        %v240 = vld [vmem:[%s1 + $0x8] sm:$0xf]
        %v241 = vld [vmem:[%s1 + $0xc] sm:$0xf]
        %v242 = vld [vmem:[%s1 + $0x10] sm:$0xf]
        %v243 = vld [vmem:[%s1 + $0x14] sm:$0xf]
        %v244 = vld [vmem:[%s1 + $0x18] sm:$0xf]
        %v245 = vld [vmem:[%s1 + $0x1c] sm:$0xf]
        %v246 = vld [vmem:[%s1 + $0x20] sm:$0xf]
        %v247 = vld [vmem:[%s1 + $0x24] sm:$0xf]
        %v248 = vld [vmem:[%s1 + $0x28] sm:$0xf]
        %v249 = vld [vmem:[%s1 + $0x2c] sm:$0xf]
        %v250 = vld [vmem:[%s1 + $0x30] sm:$0xf]
        %v251 = vld [vmem:[%s1 + $0x34] sm:$0xf]
        %v252 = vld [vmem:[%s1 + $0x38] sm:$0xf]
        %v253 = vld [vmem:[%s1 + $0x3c] sm:$0xf]
        %v262 = vunpack.c.l.b16 %v222
        %v263 = vunpack.c.l.b16 %v223
        %v264 = vunpack.c.l.b16 %v224
        %v265 = vunpack.c.l.b16 %v225
        %v266 = vunpack.c.l.b16 %v226
        %v267 = vunpack.c.l.b16 %v227
        %v268 = vunpack.c.l.b16 %v228
        %v269 = vunpack.c.l.b16 %v229
        %v270 = vpack.c.b16 %v263, %v262
        %v271 = vpack.c.b16 %v265, %v264
        %v272 = vpack.c.b16 %v267, %v266
        %v273 = vpack.c.b16 %v269, %v268
        %v294 = vunpack.c.l.b16 %v238
        %v295 = vunpack.c.l.b16 %v239
        %v296 = vunpack.c.l.b16 %v240
        %v297 = vunpack.c.l.b16 %v241
        %v298 = vunpack.c.l.b16 %v242
        %v299 = vunpack.c.l.b16 %v243
        %v300 = vunpack.c.l.b16 %v244
        %v301 = vunpack.c.l.b16 %v245
        %v302 = vunpack.c.l.b16 %v246
        %v303 = vunpack.c.l.b16 %v247
        %v304 = vunpack.c.l.b16 %v248
        %v305 = vunpack.c.l.b16 %v249
        %v306 = vunpack.c.l.b16 %v250
        %v307 = vunpack.c.l.b16 %v251
        %v308 = vunpack.c.l.b16 %v252
        %v309 = vunpack.c.l.b16 %v253
        %v310 = vpack.c.b16 %v295, %v294
        %v311 = vpack.c.b16 %v297, %v296
        %v312 = vpack.c.b16 %v299, %v298
        %v313 = vpack.c.b16 %v301, %v300
        %v314 = vpack.c.b16 %v303, %v302
        %v315 = vpack.c.b16 %v305, %v304
        %v316 = vpack.c.b16 %v307, %v306
        %v317 = vpack.c.b16 %v309, %v308
        %326 = vmatprep.subr.bf16.mxu0 0
        %327 = vmatpush1.bf16.msra.mxu0 %v310
        %328 = vmatprep.subr.bf16.mxu0 0
        %329 = vmatpush1.bf16.msra.mxu0 %v311
        %330 = vmatprep.subr.bf16.mxu0 0
        %331 = vmatpush1.bf16.msra.mxu0 %v312
        %332 = vmatprep.subr.bf16.mxu0 0
        %333 = vmatpush1.bf16.msra.mxu0 %v313
        %334 = vmatprep.subr.bf16.mxu0 0
        %335 = vmatpush1.bf16.msra.mxu0 %v314
        %336 = vmatprep.subr.bf16.mxu0 0
        %337 = vmatpush1.bf16.msra.mxu0 %v315
        %338 = vmatprep.subr.bf16.mxu0 0
        %339 = vmatpush1.bf16.msra.mxu0 %v316
        %340 = vmatprep.subr.bf16.mxu0 0
        %341 = vmatpush1.bf16.msra.mxu0 %v317
        %342 = vmatprep.subr.bf16.mxu0 0
        %343 = vmatpush1.bf16.msra.mxu0 0
        %344 = vmatprep.subr.bf16.mxu0 0
        %345 = vmatpush1.bf16.msra.mxu0 0
        %346 = vmatprep.subr.bf16.mxu0 0
        %347 = vmatpush1.bf16.msra.mxu0 0
        %348 = vmatprep.subr.bf16.mxu0 0
        %349 = vmatpush1.bf16.msra.mxu0 0
        %350 = vmatprep.subr.bf16.mxu0 0
        %351 = vmatpush1.bf16.msra.mxu0 0
        %352 = vmatprep.subr.bf16.mxu0 0
        %353 = vmatpush1.bf16.msra.mxu0 0
        %354 = vmatprep.subr.bf16.mxu0 0
        %355 = vmatpush1.bf16.msra.mxu0 0
        %356 = vmatprep.subr.bf16.mxu0 0
        %357 = vmatpush1.bf16.msra.mxu0 0
        %358 = vmatprep.mubr.bf16.mxu0 0
        %359 = vmatmul.mubr.bf16.gmra.mrb[0].mxu0 %v270
        %v360 = vpop.f32.mrb[0].mxu0
        %v361 = vadd.f32 0.0, %v360
        %v362 = vpop.f32.mrb[0].mxu0
        %v363 = vpop.f32.mrb[0].mxu0
        %v364 = vadd.f32 0.0, %v363
        %v365 = vpop.f32.mrb[0].mxu0
        %366 = vmatprep.mubr.bf16.mxu0 0
        %367 = vmatmul.mubr.bf16.gmra.mrb[0].mxu0 %v271
        %v368 = vpop.f32.mrb[0].mxu0
        %v369 = vadd.f32 0.0, %v368
        %v370 = vpop.f32.mrb[0].mxu0
        %v371 = vpop.f32.mrb[0].mxu0
        %v372 = vadd.f32 0.0, %v371
        %v373 = vpop.f32.mrb[0].mxu0
        %374 = vmatprep.mubr.bf16.mxu0 0
        %375 = vmatmul.mubr.bf16.gmra.mrb[0].mxu0 %v272
        %v376 = vpop.f32.mrb[0].mxu0
        %v377 = vadd.f32 0.0, %v376
        %v378 = vpop.f32.mrb[0].mxu0
        %v379 = vpop.f32.mrb[0].mxu0
        %v380 = vadd.f32 0.0, %v379
        %v381 = vpop.f32.mrb[0].mxu0
        %382 = vmatprep.mubr.bf16.mxu0 0
        %383 = vmatmul.mubr.bf16.gmra.mrb[0].mxu0 %v273
        %v384 = vpop.f32.mrb[0].mxu0
        %v385 = vadd.f32 0.0, %v384
        %v386 = vpop.f32.mrb[0].mxu0
        %v387 = vpop.f32.mrb[0].mxu0
        %v388 = vadd.f32 0.0, %v387
        %v389 = vpop.f32.mrb[0].mxu0
        %390 = vdwg.mxu0
        %v391 = vadd.f32 %v230, %v361
        %v392 = vadd.f32 %v231, %v364
        %v393 = vadd.f32 %v232, %v369
        %v394 = vadd.f32 %v233, %v372
        %v395 = vadd.f32 %v234, %v377
        %v396 = vadd.f32 %v235, %v380
        %v397 = vadd.f32 %v236, %v385
        %v398 = vadd.f32 %v237, %v388
        %399 = vst [vmem:[%s194] sm:$0xff] %v391
        %400 = vst [vmem:[%s194 + $0x8] sm:$0xff] %v392
        %401 = vst [vmem:[%s194 + $0x10] sm:$0xff] %v393
        %402 = vst [vmem:[%s194 + $0x18] sm:$0xff] %v394
        %403 = vst [vmem:[%s194 + $0x20] sm:$0xff] %v395
        %404 = vst [vmem:[%s194 + $0x28] sm:$0xff] %v396
        %405 = vst [vmem:[%s194 + $0x30] sm:$0xff] %v397
        %406 = vst [vmem:[%s194 + $0x38] sm:$0xff] %v398
        %s407 = scalar_lea.vmem %s211, 72
        %v408 = vld [vmem:[%s407] sm:$0xf]
        %v409 = vld [vmem:[%s407 + $0x8] sm:$0xf]
        %v410 = vld [vmem:[%s407 + $0x10] sm:$0xf]
        %v411 = vld [vmem:[%s407 + $0x18] sm:$0xf]
        %v412 = vld [vmem:[%s407 + $0x20] sm:$0xf]
        %v413 = vld [vmem:[%s407 + $0x28] sm:$0xf]
        %v414 = vld [vmem:[%s407 + $0x30] sm:$0xf]
        %v415 = vld [vmem:[%s407 + $0x38] sm:$0xf]
        %v416 = vld [vmem:[%s194] sm:$0xff]
        %v417 = vld [vmem:[%s194 + $0x8] sm:$0xff]
        %v418 = vld [vmem:[%s194 + $0x10] sm:$0xff]
        %v419 = vld [vmem:[%s194 + $0x18] sm:$0xff]
        %v420 = vld [vmem:[%s194 + $0x20] sm:$0xff]
        %v421 = vld [vmem:[%s194 + $0x28] sm:$0xff]
        %v422 = vld [vmem:[%s194 + $0x30] sm:$0xff]
        %v423 = vld [vmem:[%s194 + $0x38] sm:$0xff]
        %s424 = scalar_lea.vmem %s1, 64
        %v425 = vld [vmem:[%s424] sm:$0xf]
        %v426 = vld [vmem:[%s424 + $0x4] sm:$0xf]
        %v427 = vld [vmem:[%s424 + $0x8] sm:$0xf]
        %v428 = vld [vmem:[%s424 + $0xc] sm:$0xf]
        %v429 = vld [vmem:[%s424 + $0x10] sm:$0xf]
        %v430 = vld [vmem:[%s424 + $0x14] sm:$0xf]
        %v431 = vld [vmem:[%s424 + $0x18] sm:$0xf]
        %v432 = vld [vmem:[%s424 + $0x1c] sm:$0xf]
        %v433 = vld [vmem:[%s424 + $0x20] sm:$0xf]
        %v434 = vld [vmem:[%s424 + $0x24] sm:$0xf]
        %v435 = vld [vmem:[%s424 + $0x28] sm:$0xf]
        %v436 = vld [vmem:[%s424 + $0x2c] sm:$0xf]
        %v437 = vld [vmem:[%s424 + $0x30] sm:$0xf]
        %v438 = vld [vmem:[%s424 + $0x34] sm:$0xf]
        %v439 = vld [vmem:[%s424 + $0x38] sm:$0xf]
        %v440 = vld [vmem:[%s424 + $0x3c] sm:$0xf]
        %v449 = vunpack.c.l.b16 %v408
        %v450 = vunpack.c.l.b16 %v409
        %v451 = vunpack.c.l.b16 %v410
        %v452 = vunpack.c.l.b16 %v411
        %v453 = vunpack.c.l.b16 %v412
        %v454 = vunpack.c.l.b16 %v413
        %v455 = vunpack.c.l.b16 %v414
        %v456 = vunpack.c.l.b16 %v415
        %v457 = vpack.c.b16 %v450, %v449
        %v458 = vpack.c.b16 %v452, %v451
        %v459 = vpack.c.b16 %v454, %v453
        %v460 = vpack.c.b16 %v456, %v455
        %v481 = vunpack.c.l.b16 %v425
        %v482 = vunpack.c.l.b16 %v426
        %v483 = vunpack.c.l.b16 %v427
        %v484 = vunpack.c.l.b16 %v428
        %v485 = vunpack.c.l.b16 %v429
        %v486 = vunpack.c.l.b16 %v430
        %v487 = vunpack.c.l.b16 %v431
        %v488 = vunpack.c.l.b16 %v432
        %v489 = vunpack.c.l.b16 %v433
        %v490 = vunpack.c.l.b16 %v434
        %v491 = vunpack.c.l.b16 %v435
        %v492 = vunpack.c.l.b16 %v436
        %v493 = vunpack.c.l.b16 %v437
        %v494 = vunpack.c.l.b16 %v438
        %v495 = vunpack.c.l.b16 %v439
        %v496 = vunpack.c.l.b16 %v440
        %v497 = vpack.c.b16 %v482, %v481
        %v498 = vpack.c.b16 %v484, %v483
        %v499 = vpack.c.b16 %v486, %v485
        %v500 = vpack.c.b16 %v488, %v487
        %v501 = vpack.c.b16 %v490, %v489
        %v502 = vpack.c.b16 %v492, %v491
        %v503 = vpack.c.b16 %v494, %v493
        %v504 = vpack.c.b16 %v496, %v495
        %513 = vmatprep.subr.bf16.mxu0 0
        %514 = vmatpush1.bf16.msra.mxu0 %v497
        %515 = vmatprep.subr.bf16.mxu0 0
        %516 = vmatpush1.bf16.msra.mxu0 %v498
        %517 = vmatprep.subr.bf16.mxu0 0
        %518 = vmatpush1.bf16.msra.mxu0 %v499
        %519 = vmatprep.subr.bf16.mxu0 0
        %520 = vmatpush1.bf16.msra.mxu0 %v500
        %521 = vmatprep.subr.bf16.mxu0 0
        %522 = vmatpush1.bf16.msra.mxu0 %v501
        %523 = vmatprep.subr.bf16.mxu0 0
        %524 = vmatpush1.bf16.msra.mxu0 %v502
        %525 = vmatprep.subr.bf16.mxu0 0
        %526 = vmatpush1.bf16.msra.mxu0 %v503
        %527 = vmatprep.subr.bf16.mxu0 0
        %528 = vmatpush1.bf16.msra.mxu0 %v504
        %529 = vmatprep.subr.bf16.mxu0 0
        %530 = vmatpush1.bf16.msra.mxu0 0
        %531 = vmatprep.subr.bf16.mxu0 0
        %532 = vmatpush1.bf16.msra.mxu0 0
        %533 = vmatprep.subr.bf16.mxu0 0
        %534 = vmatpush1.bf16.msra.mxu0 0
        %535 = vmatprep.subr.bf16.mxu0 0
        %536 = vmatpush1.bf16.msra.mxu0 0
        %537 = vmatprep.subr.bf16.mxu0 0
        %538 = vmatpush1.bf16.msra.mxu0 0
        %539 = vmatprep.subr.bf16.mxu0 0
        %540 = vmatpush1.bf16.msra.mxu0 0
        %541 = vmatprep.subr.bf16.mxu0 0
        %542 = vmatpush1.bf16.msra.mxu0 0
        %543 = vmatprep.subr.bf16.mxu0 0
        %544 = vmatpush1.bf16.msra.mxu0 0
        %545 = vmatprep.mubr.bf16.mxu0 0
        %546 = vmatmul.mubr.bf16.gmra.mrb[0].mxu0 %v457
        %v547 = vpop.f32.mrb[0].mxu0
        %v548 = vadd.f32 0.0, %v547
        %v549 = vpop.f32.mrb[0].mxu0
        %v550 = vpop.f32.mrb[0].mxu0
        %v551 = vadd.f32 0.0, %v550
        %v552 = vpop.f32.mrb[0].mxu0
        %553 = vmatprep.mubr.bf16.mxu0 0
        %554 = vmatmul.mubr.bf16.gmra.mrb[0].mxu0 %v458
        %v555 = vpop.f32.mrb[0].mxu0
        %v556 = vadd.f32 0.0, %v555
        %v557 = vpop.f32.mrb[0].mxu0
        %v558 = vpop.f32.mrb[0].mxu0
        %v559 = vadd.f32 0.0, %v558
        %v560 = vpop.f32.mrb[0].mxu0
        %561 = vmatprep.mubr.bf16.mxu0 0
        %562 = vmatmul.mubr.bf16.gmra.mrb[0].mxu0 %v459
        %v563 = vpop.f32.mrb[0].mxu0
        %v564 = vadd.f32 0.0, %v563
        %v565 = vpop.f32.mrb[0].mxu0
        %v566 = vpop.f32.mrb[0].mxu0
        %v567 = vadd.f32 0.0, %v566
        %v568 = vpop.f32.mrb[0].mxu0
        %569 = vmatprep.mubr.bf16.mxu0 0
        %570 = vmatmul.mubr.bf16.gmra.mrb[0].mxu0 %v460
        %v571 = vpop.f32.mrb[0].mxu0
        %v572 = vadd.f32 0.0, %v571
        %v573 = vpop.f32.mrb[0].mxu0
        %v574 = vpop.f32.mrb[0].mxu0
        %v575 = vadd.f32 0.0, %v574
        %v576 = vpop.f32.mrb[0].mxu0
        %577 = vdwg.mxu0
        %v578 = vadd.f32 %v416, %v548
        %v579 = vadd.f32 %v417, %v551
        %v580 = vadd.f32 %v418, %v556
        %v581 = vadd.f32 %v419, %v559
        %v582 = vadd.f32 %v420, %v564
        %v583 = vadd.f32 %v421, %v567
        %v584 = vadd.f32 %v422, %v572
        %v585 = vadd.f32 %v423, %v575
        %586 = vst [vmem:[%s194] sm:$0xff] %v578
        %587 = vst [vmem:[%s194 + $0x8] sm:$0xff] %v579
        %588 = vst [vmem:[%s194 + $0x10] sm:$0xff] %v580
        %589 = vst [vmem:[%s194 + $0x18] sm:$0xff] %v581
        %590 = vst [vmem:[%s194 + $0x20] sm:$0xff] %v582
        %591 = vst [vmem:[%s194 + $0x28] sm:$0xff] %v583
        %592 = vst [vmem:[%s194 + $0x30] sm:$0xff] %v584
        %593 = vst [vmem:[%s194 + $0x38] sm:$0xff] %v585
        %v594 = vld [vmem:[%s211] sm:$0xf]
        %v595 = vld [vmem:[%s211 + $0x4] sm:$0x1]
        %v596 = vld [vmem:[%s211 + $0x8] sm:$0xf]
        %v597 = vld [vmem:[%s211 + $0xc] sm:$0x1]
        %v598 = vld [vmem:[%s211 + $0x10] sm:$0xf]
        %v599 = vld [vmem:[%s211 + $0x14] sm:$0x1]
        %v600 = vld [vmem:[%s211 + $0x18] sm:$0xf]
        %v601 = vld [vmem:[%s211 + $0x1c] sm:$0x1]
        %v602 = vld [vmem:[%s211 + $0x20] sm:$0xf]
        %v603 = vld [vmem:[%s211 + $0x24] sm:$0x1]
        %v604 = vld [vmem:[%s211 + $0x28] sm:$0xf]
        %v605 = vld [vmem:[%s211 + $0x2c] sm:$0x1]
        %v606 = vld [vmem:[%s211 + $0x30] sm:$0xf]
        %v607 = vld [vmem:[%s211 + $0x34] sm:$0x1]
        %v608 = vld [vmem:[%s211 + $0x38] sm:$0xf]
        %v609 = vld [vmem:[%s211 + $0x3c] sm:$0x1]
        %vm610 = vsmask.f32 3328
        %vm611 = vsmask.f32 7440
        %vm612 = vmor %vm610, %vm611
        %v614 = vshrl.u32 %v594, 16
        %v616 = vrot.slane %v614, 4
        %v617 = vshll.u32 %v594, 16
        %v619 = vrot.slane %v617, 5
        %v620 = vor.u32 %v616, %v619
        %v621 = vrot.slane %v620, 4
        %v623 = vshll.u32 %v595, 16
        %v625 = vrot.slane %v623, 5
        %v626 = vsel %vm612, %v621, %v625
        %v628 = vshrl.u32 %v596, 16
        %v630 = vrot.slane %v628, 4
        %v631 = vshll.u32 %v596, 16
        %v633 = vrot.slane %v631, 5
        %v634 = vor.u32 %v630, %v633
        %v635 = vrot.slane %v634, 4
        %v637 = vshll.u32 %v597, 16
        %v639 = vrot.slane %v637, 5
        %v640 = vsel %vm612, %v635, %v639
        %v642 = vshrl.u32 %v598, 16
        %v644 = vrot.slane %v642, 4
        %v645 = vshll.u32 %v598, 16
        %v647 = vrot.slane %v645, 5
        %v648 = vor.u32 %v644, %v647
        %v649 = vrot.slane %v648, 4
        %v651 = vshll.u32 %v599, 16
        %v653 = vrot.slane %v651, 5
        %v654 = vsel %vm612, %v649, %v653
        %v656 = vshrl.u32 %v600, 16
        %v658 = vrot.slane %v656, 4
        %v659 = vshll.u32 %v600, 16
        %v661 = vrot.slane %v659, 5
        %v662 = vor.u32 %v658, %v661
        %v663 = vrot.slane %v662, 4
        %v665 = vshll.u32 %v601, 16
        %v667 = vrot.slane %v665, 5
        %v668 = vsel %vm612, %v663, %v667
        %v670 = vshrl.u32 %v602, 16
        %v672 = vrot.slane %v670, 4
        %v673 = vshll.u32 %v602, 16
        %v675 = vrot.slane %v673, 5
        %v676 = vor.u32 %v672, %v675
        %v677 = vrot.slane %v676, 4
        %v679 = vshll.u32 %v603, 16
        %v681 = vrot.slane %v679, 5
        %v682 = vsel %vm612, %v677, %v681
        %v684 = vshrl.u32 %v604, 16
        %v686 = vrot.slane %v684, 4
        %v687 = vshll.u32 %v604, 16
        %v689 = vrot.slane %v687, 5
        %v690 = vor.u32 %v686, %v689
        %v691 = vrot.slane %v690, 4
        %v693 = vshll.u32 %v605, 16
        %v695 = vrot.slane %v693, 5
        %v696 = vsel %vm612, %v691, %v695
        %v698 = vshrl.u32 %v606, 16
        %v700 = vrot.slane %v698, 4
        %v701 = vshll.u32 %v606, 16
        %v703 = vrot.slane %v701, 5
        %v704 = vor.u32 %v700, %v703
        %v705 = vrot.slane %v704, 4
        %v707 = vshll.u32 %v607, 16
        %v709 = vrot.slane %v707, 5
        %v710 = vsel %vm612, %v705, %v709
        %v712 = vshrl.u32 %v608, 16
        %v714 = vrot.slane %v712, 4
        %v715 = vshll.u32 %v608, 16
        %v717 = vrot.slane %v715, 5
        %v718 = vor.u32 %v714, %v717
        %v719 = vrot.slane %v718, 4
        %v721 = vshll.u32 %v609, 16
        %v723 = vrot.slane %v721, 5
        %v724 = vsel %vm612, %v719, %v723
        %v725 = vld [vmem:[%s194] sm:$0xff]
        %v726 = vld [vmem:[%s194 + $0x8] sm:$0xff]
        %v727 = vld [vmem:[%s194 + $0x10] sm:$0xff]
        %v728 = vld [vmem:[%s194 + $0x18] sm:$0xff]
        %v729 = vld [vmem:[%s194 + $0x20] sm:$0xff]
        %v730 = vld [vmem:[%s194 + $0x28] sm:$0xff]
        %v731 = vld [vmem:[%s194 + $0x30] sm:$0xff]
        %v732 = vld [vmem:[%s194 + $0x38] sm:$0xff]
        %s733 = scalar_lea.vmem %s1, 128
        %v734 = vld [vmem:[%s733] sm:$0xf]
        %v735 = vld [vmem:[%s733 + $0x4] sm:$0xf]
        %v736 = vld [vmem:[%s733 + $0x8] sm:$0xf]
        %v737 = vld [vmem:[%s733 + $0xc] sm:$0xf]
        %v738 = vld [vmem:[%s733 + $0x10] sm:$0xf]
        %v739 = vld [vmem:[%s733 + $0x14] sm:$0xf]
        %v740 = vld [vmem:[%s733 + $0x18] sm:$0xf]
        %v741 = vld [vmem:[%s733 + $0x1c] sm:$0xf]
        %v742 = vld [vmem:[%s733 + $0x20] sm:$0xf]
        %v743 = vld [vmem:[%s733 + $0x24] sm:$0xf]
        %v744 = vld [vmem:[%s733 + $0x28] sm:$0xf]
        %v745 = vld [vmem:[%s733 + $0x2c] sm:$0xf]
        %v746 = vld [vmem:[%s733 + $0x30] sm:$0xf]
        %v747 = vld [vmem:[%s733 + $0x34] sm:$0xf]
        %v748 = vld [vmem:[%s733 + $0x38] sm:$0xf]
        %v749 = vld [vmem:[%s733 + $0x3c] sm:$0xf]
        %v750 = vunpack.c.l.b16 %v626
        %v751 = vunpack.c.l.b16 %v640
        %v752 = vunpack.c.l.b16 %v654
        %v753 = vunpack.c.l.b16 %v668
        %v754 = vunpack.c.l.b16 %v682
        %v755 = vunpack.c.l.b16 %v696
        %v756 = vunpack.c.l.b16 %v710
        %v757 = vunpack.c.l.b16 %v724
        %v758 = vpack.c.b16 %v751, %v750
        %v759 = vpack.c.b16 %v753, %v752
        %v760 = vpack.c.b16 %v755, %v754
        %v761 = vpack.c.b16 %v757, %v756
        %v782 = vunpack.c.l.b16 %v734
        %v783 = vunpack.c.l.b16 %v735
        %v784 = vunpack.c.l.b16 %v736
        %v785 = vunpack.c.l.b16 %v737
        %v786 = vunpack.c.l.b16 %v738
        %v787 = vunpack.c.l.b16 %v739
        %v788 = vunpack.c.l.b16 %v740
        %v789 = vunpack.c.l.b16 %v741
        %v790 = vunpack.c.l.b16 %v742
        %v791 = vunpack.c.l.b16 %v743
        %v792 = vunpack.c.l.b16 %v744
        %v793 = vunpack.c.l.b16 %v745
        %v794 = vunpack.c.l.b16 %v746
        %v795 = vunpack.c.l.b16 %v747
        %v796 = vunpack.c.l.b16 %v748
        %v797 = vunpack.c.l.b16 %v749
        %v798 = vpack.c.b16 %v783, %v782
        %v799 = vpack.c.b16 %v785, %v784
        %v800 = vpack.c.b16 %v787, %v786
        %v801 = vpack.c.b16 %v789, %v788
        %v802 = vpack.c.b16 %v791, %v790
        %v803 = vpack.c.b16 %v793, %v792
        %v804 = vpack.c.b16 %v795, %v794
        %v805 = vpack.c.b16 %v797, %v796
        %814 = vmatprep.subr.bf16.mxu0 0
        %815 = vmatpush1.bf16.msra.mxu0 %v798
        %816 = vmatprep.subr.bf16.mxu0 0
        %817 = vmatpush1.bf16.msra.mxu0 %v799
        %818 = vmatprep.subr.bf16.mxu0 0
        %819 = vmatpush1.bf16.msra.mxu0 %v800
        %820 = vmatprep.subr.bf16.mxu0 0
        %821 = vmatpush1.bf16.msra.mxu0 %v801
        %822 = vmatprep.subr.bf16.mxu0 0
        %823 = vmatpush1.bf16.msra.mxu0 %v802
        %824 = vmatprep.subr.bf16.mxu0 0
        %825 = vmatpush1.bf16.msra.mxu0 %v803
        %826 = vmatprep.subr.bf16.mxu0 0
        %827 = vmatpush1.bf16.msra.mxu0 %v804
        %828 = vmatprep.subr.bf16.mxu0 0
        %829 = vmatpush1.bf16.msra.mxu0 %v805
        %830 = vmatprep.subr.bf16.mxu0 0
        %831 = vmatpush1.bf16.msra.mxu0 0
        %832 = vmatprep.subr.bf16.mxu0 0
        %833 = vmatpush1.bf16.msra.mxu0 0
        %834 = vmatprep.subr.bf16.mxu0 0
        %835 = vmatpush1.bf16.msra.mxu0 0
        %836 = vmatprep.subr.bf16.mxu0 0
        %837 = vmatpush1.bf16.msra.mxu0 0
        %838 = vmatprep.subr.bf16.mxu0 0
        %839 = vmatpush1.bf16.msra.mxu0 0
        %840 = vmatprep.subr.bf16.mxu0 0
        %841 = vmatpush1.bf16.msra.mxu0 0
        %842 = vmatprep.subr.bf16.mxu0 0
        %843 = vmatpush1.bf16.msra.mxu0 0
        %844 = vmatprep.subr.bf16.mxu0 0
        %845 = vmatpush1.bf16.msra.mxu0 0
        %846 = vmatprep.mubr.bf16.mxu0 0
        %847 = vmatmul.mubr.bf16.gmra.mrb[0].mxu0 %v758
        %v848 = vpop.f32.mrb[0].mxu0
        %v849 = vadd.f32 0.0, %v848
        %v850 = vpop.f32.mrb[0].mxu0
        %v851 = vpop.f32.mrb[0].mxu0
        %v852 = vadd.f32 0.0, %v851
        %v853 = vpop.f32.mrb[0].mxu0
        %854 = vmatprep.mubr.bf16.mxu0 0
        %855 = vmatmul.mubr.bf16.gmra.mrb[0].mxu0 %v759
        %v856 = vpop.f32.mrb[0].mxu0
        %v857 = vadd.f32 0.0, %v856
        %v858 = vpop.f32.mrb[0].mxu0
        %v859 = vpop.f32.mrb[0].mxu0
        %v860 = vadd.f32 0.0, %v859
        %v861 = vpop.f32.mrb[0].mxu0
        %862 = vmatprep.mubr.bf16.mxu0 0
        %863 = vmatmul.mubr.bf16.gmra.mrb[0].mxu0 %v760
        %v864 = vpop.f32.mrb[0].mxu0
        %v865 = vadd.f32 0.0, %v864
        %v866 = vpop.f32.mrb[0].mxu0
        %v867 = vpop.f32.mrb[0].mxu0
        %v868 = vadd.f32 0.0, %v867
        %v869 = vpop.f32.mrb[0].mxu0
        %870 = vmatprep.mubr.bf16.mxu0 0
        %871 = vmatmul.mubr.bf16.gmra.mrb[0].mxu0 %v761
        %v872 = vpop.f32.mrb[0].mxu0
        %v873 = vadd.f32 0.0, %v872
        %v874 = vpop.f32.mrb[0].mxu0
        %v875 = vpop.f32.mrb[0].mxu0
        %v876 = vadd.f32 0.0, %v875
        %v877 = vpop.f32.mrb[0].mxu0
        %878 = vdwg.mxu0
        %v879 = vadd.f32 %v725, %v849
        %v880 = vadd.f32 %v726, %v852
        %v881 = vadd.f32 %v727, %v857
        %v882 = vadd.f32 %v728, %v860
        %v883 = vadd.f32 %v729, %v865
        %v884 = vadd.f32 %v730, %v868
        %v885 = vadd.f32 %v731, %v873
        %v886 = vadd.f32 %v732, %v876
        %887 = vst [vmem:[%s194] sm:$0xff] %v879
        %888 = vst [vmem:[%s194 + $0x8] sm:$0xff] %v880
        %889 = vst [vmem:[%s194 + $0x10] sm:$0xff] %v881
        %890 = vst [vmem:[%s194 + $0x18] sm:$0xff] %v882
        %891 = vst [vmem:[%s194 + $0x20] sm:$0xff] %v883
        %892 = vst [vmem:[%s194 + $0x28] sm:$0xff] %v884
        %893 = vst [vmem:[%s194 + $0x30] sm:$0xff] %v885
        %894 = vst [vmem:[%s194 + $0x38] sm:$0xff] %v886
        %s895 = scalar_lea.vmem %s211, 144
        %v896 = vld [vmem:[%s895] sm:$0xf]
        %v897 = vld [vmem:[%s895 + $0x8] sm:$0xf]
        %v898 = vld [vmem:[%s895 + $0x10] sm:$0xf]
        %v899 = vld [vmem:[%s895 + $0x18] sm:$0xf]
        %v900 = vld [vmem:[%s895 + $0x20] sm:$0xf]
        %v901 = vld [vmem:[%s895 + $0x28] sm:$0xf]
        %v902 = vld [vmem:[%s895 + $0x30] sm:$0xf]
        %v903 = vld [vmem:[%s895 + $0x38] sm:$0xf]
        %v904 = vld [vmem:[%s194] sm:$0xff]
        %v905 = vld [vmem:[%s194 + $0x8] sm:$0xff]
        %v906 = vld [vmem:[%s194 + $0x10] sm:$0xff]
        %v907 = vld [vmem:[%s194 + $0x18] sm:$0xff]
        %v908 = vld [vmem:[%s194 + $0x20] sm:$0xff]
        %v909 = vld [vmem:[%s194 + $0x28] sm:$0xff]
        %v910 = vld [vmem:[%s194 + $0x30] sm:$0xff]
        %v911 = vld [vmem:[%s194 + $0x38] sm:$0xff]
        %s912 = scalar_lea.vmem %s1, 192
        %v913 = vld [vmem:[%s912] sm:$0xf]
        %v914 = vld [vmem:[%s912 + $0x4] sm:$0xf]
        %v915 = vld [vmem:[%s912 + $0x8] sm:$0xf]
        %v916 = vld [vmem:[%s912 + $0xc] sm:$0xf]
        %v917 = vld [vmem:[%s912 + $0x10] sm:$0xf]
        %v918 = vld [vmem:[%s912 + $0x14] sm:$0xf]
        %v919 = vld [vmem:[%s912 + $0x18] sm:$0xf]
        %v920 = vld [vmem:[%s912 + $0x1c] sm:$0xf]
        %v921 = vld [vmem:[%s912 + $0x20] sm:$0xf]
        %v922 = vld [vmem:[%s912 + $0x24] sm:$0xf]
        %v923 = vld [vmem:[%s912 + $0x28] sm:$0xf]
        %v924 = vld [vmem:[%s912 + $0x2c] sm:$0xf]
        %v925 = vld [vmem:[%s912 + $0x30] sm:$0xf]
        %v926 = vld [vmem:[%s912 + $0x34] sm:$0xf]
        %v927 = vld [vmem:[%s912 + $0x38] sm:$0xf]
        %v928 = vld [vmem:[%s912 + $0x3c] sm:$0xf]
        %v937 = vunpack.c.l.b16 %v896
        %v938 = vunpack.c.l.b16 %v897
        %v939 = vunpack.c.l.b16 %v898
        %v940 = vunpack.c.l.b16 %v899
        %v941 = vunpack.c.l.b16 %v900
        %v942 = vunpack.c.l.b16 %v901
        %v943 = vunpack.c.l.b16 %v902
        %v944 = vunpack.c.l.b16 %v903
        %v945 = vpack.c.b16 %v938, %v937
        %v946 = vpack.c.b16 %v940, %v939
        %v947 = vpack.c.b16 %v942, %v941
        %v948 = vpack.c.b16 %v944, %v943
        %v969 = vunpack.c.l.b16 %v913
        %v970 = vunpack.c.l.b16 %v914
        %v971 = vunpack.c.l.b16 %v915
        %v972 = vunpack.c.l.b16 %v916
        %v973 = vunpack.c.l.b16 %v917
        %v974 = vunpack.c.l.b16 %v918
        %v975 = vunpack.c.l.b16 %v919
        %v976 = vunpack.c.l.b16 %v920
        %v977 = vunpack.c.l.b16 %v921
        %v978 = vunpack.c.l.b16 %v922
        %v979 = vunpack.c.l.b16 %v923
        %v980 = vunpack.c.l.b16 %v924
        %v981 = vunpack.c.l.b16 %v925
        %v982 = vunpack.c.l.b16 %v926
        %v983 = vunpack.c.l.b16 %v927
        %v984 = vunpack.c.l.b16 %v928
        %v985 = vpack.c.b16 %v970, %v969
        %v986 = vpack.c.b16 %v972, %v971
        %v987 = vpack.c.b16 %v974, %v973
        %v988 = vpack.c.b16 %v976, %v975
        %v989 = vpack.c.b16 %v978, %v977
        %v990 = vpack.c.b16 %v980, %v979
        %v991 = vpack.c.b16 %v982, %v981
        %v992 = vpack.c.b16 %v984, %v983
        %1001 = vmatprep.subr.bf16.mxu0 0
        %1002 = vmatpush1.bf16.msra.mxu0 %v985
        %1003 = vmatprep.subr.bf16.mxu0 0
        %1004 = vmatpush1.bf16.msra.mxu0 %v986
        %1005 = vmatprep.subr.bf16.mxu0 0
        %1006 = vmatpush1.bf16.msra.mxu0 %v987
        %1007 = vmatprep.subr.bf16.mxu0 0
        %1008 = vmatpush1.bf16.msra.mxu0 %v988
        %1009 = vmatprep.subr.bf16.mxu0 0
        %1010 = vmatpush1.bf16.msra.mxu0 %v989
        %1011 = vmatprep.subr.bf16.mxu0 0
        %1012 = vmatpush1.bf16.msra.mxu0 %v990
        %1013 = vmatprep.subr.bf16.mxu0 0
        %1014 = vmatpush1.bf16.msra.mxu0 %v991
        %1015 = vmatprep.subr.bf16.mxu0 0
        %1016 = vmatpush1.bf16.msra.mxu0 %v992
        %1017 = vmatprep.subr.bf16.mxu0 0
        %1018 = vmatpush1.bf16.msra.mxu0 0
        %1019 = vmatprep.subr.bf16.mxu0 0
        %1020 = vmatpush1.bf16.msra.mxu0 0
        %1021 = vmatprep.subr.bf16.mxu0 0
        %1022 = vmatpush1.bf16.msra.mxu0 0
        %1023 = vmatprep.subr.bf16.mxu0 0
        %1024 = vmatpush1.bf16.msra.mxu0 0
        %1025 = vmatprep.subr.bf16.mxu0 0
        %1026 = vmatpush1.bf16.msra.mxu0 0
        %1027 = vmatprep.subr.bf16.mxu0 0
        %1028 = vmatpush1.bf16.msra.mxu0 0
        %1029 = vmatprep.subr.bf16.mxu0 0
        %1030 = vmatpush1.bf16.msra.mxu0 0
        %1031 = vmatprep.subr.bf16.mxu0 0
        %1032 = vmatpush1.bf16.msra.mxu0 0
        %1033 = vmatprep.mubr.bf16.mxu0 0
        %1034 = vmatmul.mubr.bf16.gmra.mrb[0].mxu0 %v945
        %v1035 = vpop.f32.mrb[0].mxu0
        %v1036 = vadd.f32 0.0, %v1035
        %v1037 = vpop.f32.mrb[0].mxu0
        %v1038 = vpop.f32.mrb[0].mxu0
        %v1039 = vadd.f32 0.0, %v1038
        %v1040 = vpop.f32.mrb[0].mxu0
        %1041 = vmatprep.mubr.bf16.mxu0 0
        %1042 = vmatmul.mubr.bf16.gmra.mrb[0].mxu0 %v946
        %v1043 = vpop.f32.mrb[0].mxu0
        %v1044 = vadd.f32 0.0, %v1043
        %v1045 = vpop.f32.mrb[0].mxu0
        %v1046 = vpop.f32.mrb[0].mxu0
        %v1047 = vadd.f32 0.0, %v1046
        %v1048 = vpop.f32.mrb[0].mxu0
        %1049 = vmatprep.mubr.bf16.mxu0 0
        %1050 = vmatmul.mubr.bf16.gmra.mrb[0].mxu0 %v947
        %v1051 = vpop.f32.mrb[0].mxu0
        %v1052 = vadd.f32 0.0, %v1051
        %v1053 = vpop.f32.mrb[0].mxu0
        %v1054 = vpop.f32.mrb[0].mxu0
        %v1055 = vadd.f32 0.0, %v1054
        %v1056 = vpop.f32.mrb[0].mxu0
        %1057 = vmatprep.mubr.bf16.mxu0 0
        %1058 = vmatmul.mubr.bf16.gmra.mrb[0].mxu0 %v948
        %v1059 = vpop.f32.mrb[0].mxu0
        %v1060 = vadd.f32 0.0, %v1059
        %v1061 = vpop.f32.mrb[0].mxu0
        %v1062 = vpop.f32.mrb[0].mxu0
        %v1063 = vadd.f32 0.0, %v1062
        %v1064 = vpop.f32.mrb[0].mxu0
        %1065 = vdwg.mxu0
        %v1066 = vadd.f32 %v904, %v1036
        %v1067 = vadd.f32 %v905, %v1039
        %v1068 = vadd.f32 %v906, %v1044
        %v1069 = vadd.f32 %v907, %v1047
        %v1070 = vadd.f32 %v908, %v1052
        %v1071 = vadd.f32 %v909, %v1055
        %v1072 = vadd.f32 %v910, %v1060
        %v1073 = vadd.f32 %v911, %v1063
        %1074 = vst [vmem:[%s194] sm:$0xff] %v1066
        %1075 = vst [vmem:[%s194 + $0x8] sm:$0xff] %v1067
        %1076 = vst [vmem:[%s194 + $0x10] sm:$0xff] %v1068
        %1077 = vst [vmem:[%s194 + $0x18] sm:$0xff] %v1069
        %1078 = vst [vmem:[%s194 + $0x20] sm:$0xff] %v1070
        %1079 = vst [vmem:[%s194 + $0x28] sm:$0xff] %v1071
        %1080 = vst [vmem:[%s194 + $0x30] sm:$0xff] %v1072
        %1081 = vst [vmem:[%s194 + $0x38] sm:$0xff] %v1073
        %s1082 = scalar_lea.vmem %s211, 216
        %v1083 = vld [vmem:[%s1082] sm:$0xf]
        %v1084 = vld [vmem:[%s1082 + $0x8] sm:$0xf]
        %v1085 = vld [vmem:[%s1082 + $0x10] sm:$0xf]
        %v1086 = vld [vmem:[%s1082 + $0x18] sm:$0xf]
        %v1087 = vld [vmem:[%s1082 + $0x20] sm:$0xf]
        %v1088 = vld [vmem:[%s1082 + $0x28] sm:$0xf]
        %v1089 = vld [vmem:[%s1082 + $0x30] sm:$0xf]
        %v1090 = vld [vmem:[%s1082 + $0x38] sm:$0xf]
        %v1091 = vld [vmem:[%s194] sm:$0xff]
        %v1092 = vld [vmem:[%s194 + $0x8] sm:$0xff]
        %v1093 = vld [vmem:[%s194 + $0x10] sm:$0xff]
        %v1094 = vld [vmem:[%s194 + $0x18] sm:$0xff]
        %v1095 = vld [vmem:[%s194 + $0x20] sm:$0xff]
        %v1096 = vld [vmem:[%s194 + $0x28] sm:$0xff]
        %v1097 = vld [vmem:[%s194 + $0x30] sm:$0xff]
        %v1098 = vld [vmem:[%s194 + $0x38] sm:$0xff]
        %s1099 = scalar_lea.vmem %s1, 256
        %v1100 = vld [vmem:[%s1099] sm:$0xf]
        %v1101 = vld [vmem:[%s1099 + $0x4] sm:$0xf]
        %v1102 = vld [vmem:[%s1099 + $0x8] sm:$0xf]
        %v1103 = vld [vmem:[%s1099 + $0xc] sm:$0xf]
        %v1104 = vld [vmem:[%s1099 + $0x10] sm:$0xf]
        %v1105 = vld [vmem:[%s1099 + $0x14] sm:$0xf]
        %v1106 = vld [vmem:[%s1099 + $0x18] sm:$0xf]
        %v1107 = vld [vmem:[%s1099 + $0x1c] sm:$0xf]
        %v1108 = vld [vmem:[%s1099 + $0x20] sm:$0xf]
        %v1109 = vld [vmem:[%s1099 + $0x24] sm:$0xf]
        %v1110 = vld [vmem:[%s1099 + $0x28] sm:$0xf]
        %v1111 = vld [vmem:[%s1099 + $0x2c] sm:$0xf]
        %v1112 = vld [vmem:[%s1099 + $0x30] sm:$0xf]
        %v1113 = vld [vmem:[%s1099 + $0x34] sm:$0xf]
        %v1114 = vld [vmem:[%s1099 + $0x38] sm:$0xf]
        %v1115 = vld [vmem:[%s1099 + $0x3c] sm:$0xf]
        %v1124 = vunpack.c.l.b16 %v1083
        %v1125 = vunpack.c.l.b16 %v1084
        %v1126 = vunpack.c.l.b16 %v1085
        %v1127 = vunpack.c.l.b16 %v1086
        %v1128 = vunpack.c.l.b16 %v1087
        %v1129 = vunpack.c.l.b16 %v1088
        %v1130 = vunpack.c.l.b16 %v1089
        %v1131 = vunpack.c.l.b16 %v1090
        %v1132 = vpack.c.b16 %v1125, %v1124
        %v1133 = vpack.c.b16 %v1127, %v1126
        %v1134 = vpack.c.b16 %v1129, %v1128
        %v1135 = vpack.c.b16 %v1131, %v1130
        %v1156 = vunpack.c.l.b16 %v1100
        %v1157 = vunpack.c.l.b16 %v1101
        %v1158 = vunpack.c.l.b16 %v1102
        %v1159 = vunpack.c.l.b16 %v1103
        %v1160 = vunpack.c.l.b16 %v1104
        %v1161 = vunpack.c.l.b16 %v1105
        %v1162 = vunpack.c.l.b16 %v1106
        %v1163 = vunpack.c.l.b16 %v1107
        %v1164 = vunpack.c.l.b16 %v1108
        %v1165 = vunpack.c.l.b16 %v1109
        %v1166 = vunpack.c.l.b16 %v1110
        %v1167 = vunpack.c.l.b16 %v1111
        %v1168 = vunpack.c.l.b16 %v1112
        %v1169 = vunpack.c.l.b16 %v1113
        %v1170 = vunpack.c.l.b16 %v1114
        %v1171 = vunpack.c.l.b16 %v1115
        %v1172 = vpack.c.b16 %v1157, %v1156
        %v1173 = vpack.c.b16 %v1159, %v1158
        %v1174 = vpack.c.b16 %v1161, %v1160
        %v1175 = vpack.c.b16 %v1163, %v1162
        %v1176 = vpack.c.b16 %v1165, %v1164
        %v1177 = vpack.c.b16 %v1167, %v1166
        %v1178 = vpack.c.b16 %v1169, %v1168
        %v1179 = vpack.c.b16 %v1171, %v1170
        %1188 = vmatprep.subr.bf16.mxu0 0
        %1189 = vmatpush1.bf16.msra.mxu0 %v1172
        %1190 = vmatprep.subr.bf16.mxu0 0
        %1191 = vmatpush1.bf16.msra.mxu0 %v1173
        %1192 = vmatprep.subr.bf16.mxu0 0
        %1193 = vmatpush1.bf16.msra.mxu0 %v1174
        %1194 = vmatprep.subr.bf16.mxu0 0
        %1195 = vmatpush1.bf16.msra.mxu0 %v1175
        %1196 = vmatprep.subr.bf16.mxu0 0
        %1197 = vmatpush1.bf16.msra.mxu0 %v1176
        %1198 = vmatprep.subr.bf16.mxu0 0
        %1199 = vmatpush1.bf16.msra.mxu0 %v1177
        %1200 = vmatprep.subr.bf16.mxu0 0
        %1201 = vmatpush1.bf16.msra.mxu0 %v1178
        %1202 = vmatprep.subr.bf16.mxu0 0
        %1203 = vmatpush1.bf16.msra.mxu0 %v1179
        %1204 = vmatprep.subr.bf16.mxu0 0
        %1205 = vmatpush1.bf16.msra.mxu0 0
        %1206 = vmatprep.subr.bf16.mxu0 0
        %1207 = vmatpush1.bf16.msra.mxu0 0
        %1208 = vmatprep.subr.bf16.mxu0 0
        %1209 = vmatpush1.bf16.msra.mxu0 0
        %1210 = vmatprep.subr.bf16.mxu0 0
        %1211 = vmatpush1.bf16.msra.mxu0 0
        %1212 = vmatprep.subr.bf16.mxu0 0
        %1213 = vmatpush1.bf16.msra.mxu0 0
        %1214 = vmatprep.subr.bf16.mxu0 0
        %1215 = vmatpush1.bf16.msra.mxu0 0
        %1216 = vmatprep.subr.bf16.mxu0 0
        %1217 = vmatpush1.bf16.msra.mxu0 0
        %1218 = vmatprep.subr.bf16.mxu0 0
        %1219 = vmatpush1.bf16.msra.mxu0 0
        %1220 = vmatprep.mubr.bf16.mxu0 0
        %1221 = vmatmul.mubr.bf16.gmra.mrb[0].mxu0 %v1132
        %v1222 = vpop.f32.mrb[0].mxu0
        %v1223 = vadd.f32 0.0, %v1222
        %v1224 = vpop.f32.mrb[0].mxu0
        %v1225 = vpop.f32.mrb[0].mxu0
        %v1226 = vadd.f32 0.0, %v1225
        %v1227 = vpop.f32.mrb[0].mxu0
        %1228 = vmatprep.mubr.bf16.mxu0 0
        %1229 = vmatmul.mubr.bf16.gmra.mrb[0].mxu0 %v1133
        %v1230 = vpop.f32.mrb[0].mxu0
        %v1231 = vadd.f32 0.0, %v1230
        %v1232 = vpop.f32.mrb[0].mxu0
        %v1233 = vpop.f32.mrb[0].mxu0
        %v1234 = vadd.f32 0.0, %v1233
        %v1235 = vpop.f32.mrb[0].mxu0
        %1236 = vmatprep.mubr.bf16.mxu0 0
        %1237 = vmatmul.mubr.bf16.gmra.mrb[0].mxu0 %v1134
        %v1238 = vpop.f32.mrb[0].mxu0
        %v1239 = vadd.f32 0.0, %v1238
        %v1240 = vpop.f32.mrb[0].mxu0
        %v1241 = vpop.f32.mrb[0].mxu0
        %v1242 = vadd.f32 0.0, %v1241
        %v1243 = vpop.f32.mrb[0].mxu0
        %1244 = vmatprep.mubr.bf16.mxu0 0
        %1245 = vmatmul.mubr.bf16.gmra.mrb[0].mxu0 %v1135
        %v1246 = vpop.f32.mrb[0].mxu0
        %v1247 = vadd.f32 0.0, %v1246
        %v1248 = vpop.f32.mrb[0].mxu0
        %v1249 = vpop.f32.mrb[0].mxu0
        %v1250 = vadd.f32 0.0, %v1249
        %v1251 = vpop.f32.mrb[0].mxu0
        %1252 = vdwg.mxu0
        %v1253 = vadd.f32 %v1091, %v1223
        %v1254 = vadd.f32 %v1092, %v1226
        %v1255 = vadd.f32 %v1093, %v1231
        %v1256 = vadd.f32 %v1094, %v1234
        %v1257 = vadd.f32 %v1095, %v1239
        %v1258 = vadd.f32 %v1096, %v1242
        %v1259 = vadd.f32 %v1097, %v1247
        %v1260 = vadd.f32 %v1098, %v1250
        %1261 = vst [vmem:[%s194] sm:$0xff] %v1253
        %1262 = vst [vmem:[%s194 + $0x8] sm:$0xff] %v1254
        %1263 = vst [vmem:[%s194 + $0x10] sm:$0xff] %v1255
        %1264 = vst [vmem:[%s194 + $0x18] sm:$0xff] %v1256
        %1265 = vst [vmem:[%s194 + $0x20] sm:$0xff] %v1257
        %1266 = vst [vmem:[%s194 + $0x28] sm:$0xff] %v1258
        %1267 = vst [vmem:[%s194 + $0x30] sm:$0xff] %v1259
        %1268 = vst [vmem:[%s194 + $0x38] sm:$0xff] %v1260
        %v1269 = vld [vmem:[%s895] sm:$0xf]
        %v1270 = vld [vmem:[%s895 + $0x4] sm:$0x1]
        %v1271 = vld [vmem:[%s895 + $0x8] sm:$0xf]
        %v1272 = vld [vmem:[%s895 + $0xc] sm:$0x1]
        %v1273 = vld [vmem:[%s895 + $0x10] sm:$0xf]
        %v1274 = vld [vmem:[%s895 + $0x14] sm:$0x1]
        %v1275 = vld [vmem:[%s895 + $0x18] sm:$0xf]
        %v1276 = vld [vmem:[%s895 + $0x1c] sm:$0x1]
        %v1277 = vld [vmem:[%s895 + $0x20] sm:$0xf]
        %v1278 = vld [vmem:[%s895 + $0x24] sm:$0x1]
        %v1279 = vld [vmem:[%s895 + $0x28] sm:$0xf]
        %v1280 = vld [vmem:[%s895 + $0x2c] sm:$0x1]
        %v1281 = vld [vmem:[%s895 + $0x30] sm:$0xf]
        %v1282 = vld [vmem:[%s895 + $0x34] sm:$0x1]
        %v1283 = vld [vmem:[%s895 + $0x38] sm:$0xf]
        %v1284 = vld [vmem:[%s895 + $0x3c] sm:$0x1]
        %v1286 = vshrl.u32 %v1269, 16
        %v1288 = vrot.slane %v1286, 4
        %v1289 = vshll.u32 %v1269, 16
        %v1291 = vrot.slane %v1289, 5
        %v1292 = vor.u32 %v1288, %v1291
        %v1293 = vrot.slane %v1292, 4
        %v1295 = vshll.u32 %v1270, 16
        %v1297 = vrot.slane %v1295, 5
        %v1298 = vsel %vm612, %v1293, %v1297
        %v1300 = vshrl.u32 %v1271, 16
        %v1302 = vrot.slane %v1300, 4
        %v1303 = vshll.u32 %v1271, 16
        %v1305 = vrot.slane %v1303, 5
        %v1306 = vor.u32 %v1302, %v1305
        %v1307 = vrot.slane %v1306, 4
        %v1309 = vshll.u32 %v1272, 16
        %v1311 = vrot.slane %v1309, 5
        %v1312 = vsel %vm612, %v1307, %v1311
        %v1314 = vshrl.u32 %v1273, 16
        %v1316 = vrot.slane %v1314, 4
        %v1317 = vshll.u32 %v1273, 16
        %v1319 = vrot.slane %v1317, 5
        %v1320 = vor.u32 %v1316, %v1319
        %v1321 = vrot.slane %v1320, 4
        %v1323 = vshll.u32 %v1274, 16
        %v1325 = vrot.slane %v1323, 5
        %v1326 = vsel %vm612, %v1321, %v1325
        %v1328 = vshrl.u32 %v1275, 16
        %v1330 = vrot.slane %v1328, 4
        %v1331 = vshll.u32 %v1275, 16
        %v1333 = vrot.slane %v1331, 5
        %v1334 = vor.u32 %v1330, %v1333
        %v1335 = vrot.slane %v1334, 4
        %v1337 = vshll.u32 %v1276, 16
        %v1339 = vrot.slane %v1337, 5
        %v1340 = vsel %vm612, %v1335, %v1339
        %v1342 = vshrl.u32 %v1277, 16
        %v1344 = vrot.slane %v1342, 4
        %v1345 = vshll.u32 %v1277, 16
        %v1347 = vrot.slane %v1345, 5
        %v1348 = vor.u32 %v1344, %v1347
        %v1349 = vrot.slane %v1348, 4
        %v1351 = vshll.u32 %v1278, 16
        %v1353 = vrot.slane %v1351, 5
        %v1354 = vsel %vm612, %v1349, %v1353
        %v1356 = vshrl.u32 %v1279, 16
        %v1358 = vrot.slane %v1356, 4
        %v1359 = vshll.u32 %v1279, 16
        %v1361 = vrot.slane %v1359, 5
        %v1362 = vor.u32 %v1358, %v1361
        %v1363 = vrot.slane %v1362, 4
        %v1365 = vshll.u32 %v1280, 16
        %v1367 = vrot.slane %v1365, 5
        %v1368 = vsel %vm612, %v1363, %v1367
        %v1370 = vshrl.u32 %v1281, 16
        %v1372 = vrot.slane %v1370, 4
        %v1373 = vshll.u32 %v1281, 16
        %v1375 = vrot.slane %v1373, 5
        %v1376 = vor.u32 %v1372, %v1375
        %v1377 = vrot.slane %v1376, 4
        %v1379 = vshll.u32 %v1282, 16
        %v1381 = vrot.slane %v1379, 5
        %v1382 = vsel %vm612, %v1377, %v1381
        %v1384 = vshrl.u32 %v1283, 16
        %v1386 = vrot.slane %v1384, 4
        %v1387 = vshll.u32 %v1283, 16
        %v1389 = vrot.slane %v1387, 5
        %v1390 = vor.u32 %v1386, %v1389
        %v1391 = vrot.slane %v1390, 4
        %v1393 = vshll.u32 %v1284, 16
        %v1395 = vrot.slane %v1393, 5
        %v1396 = vsel %vm612, %v1391, %v1395
        %v1397 = vld [vmem:[%s194] sm:$0xff]
        %v1398 = vld [vmem:[%s194 + $0x8] sm:$0xff]
        %v1399 = vld [vmem:[%s194 + $0x10] sm:$0xff]
        %v1400 = vld [vmem:[%s194 + $0x18] sm:$0xff]
        %v1401 = vld [vmem:[%s194 + $0x20] sm:$0xff]
        %v1402 = vld [vmem:[%s194 + $0x28] sm:$0xff]
        %v1403 = vld [vmem:[%s194 + $0x30] sm:$0xff]
        %v1404 = vld [vmem:[%s194 + $0x38] sm:$0xff]
        %s1405 = scalar_lea.vmem %s1, 320
        %v1406 = vld [vmem:[%s1405] sm:$0xf]
        %v1407 = vld [vmem:[%s1405 + $0x4] sm:$0xf]
        %v1408 = vld [vmem:[%s1405 + $0x8] sm:$0xf]
        %v1409 = vld [vmem:[%s1405 + $0xc] sm:$0xf]
        %v1410 = vld [vmem:[%s1405 + $0x10] sm:$0xf]
        %v1411 = vld [vmem:[%s1405 + $0x14] sm:$0xf]
        %v1412 = vld [vmem:[%s1405 + $0x18] sm:$0xf]
        %v1413 = vld [vmem:[%s1405 + $0x1c] sm:$0xf]
        %v1414 = vld [vmem:[%s1405 + $0x20] sm:$0xf]
        %v1415 = vld [vmem:[%s1405 + $0x24] sm:$0xf]
        %v1416 = vld [vmem:[%s1405 + $0x28] sm:$0xf]
        %v1417 = vld [vmem:[%s1405 + $0x2c] sm:$0xf]
        %v1418 = vld [vmem:[%s1405 + $0x30] sm:$0xf]
        %v1419 = vld [vmem:[%s1405 + $0x34] sm:$0xf]
        %v1420 = vld [vmem:[%s1405 + $0x38] sm:$0xf]
        %v1421 = vld [vmem:[%s1405 + $0x3c] sm:$0xf]
        %v1422 = vunpack.c.l.b16 %v1298
        %v1423 = vunpack.c.l.b16 %v1312
        %v1424 = vunpack.c.l.b16 %v1326
        %v1425 = vunpack.c.l.b16 %v1340
        %v1426 = vunpack.c.l.b16 %v1354
        %v1427 = vunpack.c.l.b16 %v1368
        %v1428 = vunpack.c.l.b16 %v1382
        %v1429 = vunpack.c.l.b16 %v1396
        %v1430 = vpack.c.b16 %v1423, %v1422
        %v1431 = vpack.c.b16 %v1425, %v1424
        %v1432 = vpack.c.b16 %v1427, %v1426
        %v1433 = vpack.c.b16 %v1429, %v1428
        %v1454 = vunpack.c.l.b16 %v1406
        %v1455 = vunpack.c.l.b16 %v1407
        %v1456 = vunpack.c.l.b16 %v1408
        %v1457 = vunpack.c.l.b16 %v1409
        %v1458 = vunpack.c.l.b16 %v1410
        %v1459 = vunpack.c.l.b16 %v1411
        %v1460 = vunpack.c.l.b16 %v1412
        %v1461 = vunpack.c.l.b16 %v1413
        %v1462 = vunpack.c.l.b16 %v1414
        %v1463 = vunpack.c.l.b16 %v1415
        %v1464 = vunpack.c.l.b16 %v1416
        %v1465 = vunpack.c.l.b16 %v1417
        %v1466 = vunpack.c.l.b16 %v1418
        %v1467 = vunpack.c.l.b16 %v1419
        %v1468 = vunpack.c.l.b16 %v1420
        %v1469 = vunpack.c.l.b16 %v1421
        %v1470 = vpack.c.b16 %v1455, %v1454
        %v1471 = vpack.c.b16 %v1457, %v1456
        %v1472 = vpack.c.b16 %v1459, %v1458
        %v1473 = vpack.c.b16 %v1461, %v1460
        %v1474 = vpack.c.b16 %v1463, %v1462
        %v1475 = vpack.c.b16 %v1465, %v1464
        %v1476 = vpack.c.b16 %v1467, %v1466
        %v1477 = vpack.c.b16 %v1469, %v1468
        %1486 = vmatprep.subr.bf16.mxu0 0
        %1487 = vmatpush1.bf16.msra.mxu0 %v1470
        %1488 = vmatprep.subr.bf16.mxu0 0
        %1489 = vmatpush1.bf16.msra.mxu0 %v1471
        %1490 = vmatprep.subr.bf16.mxu0 0
        %1491 = vmatpush1.bf16.msra.mxu0 %v1472
        %1492 = vmatprep.subr.bf16.mxu0 0
        %1493 = vmatpush1.bf16.msra.mxu0 %v1473
        %1494 = vmatprep.subr.bf16.mxu0 0
        %1495 = vmatpush1.bf16.msra.mxu0 %v1474
        %1496 = vmatprep.subr.bf16.mxu0 0
        %1497 = vmatpush1.bf16.msra.mxu0 %v1475
        %1498 = vmatprep.subr.bf16.mxu0 0
        %1499 = vmatpush1.bf16.msra.mxu0 %v1476
        %1500 = vmatprep.subr.bf16.mxu0 0
        %1501 = vmatpush1.bf16.msra.mxu0 %v1477
        %1502 = vmatprep.subr.bf16.mxu0 0
        %1503 = vmatpush1.bf16.msra.mxu0 0
        %1504 = vmatprep.subr.bf16.mxu0 0
        %1505 = vmatpush1.bf16.msra.mxu0 0
        %1506 = vmatprep.subr.bf16.mxu0 0
        %1507 = vmatpush1.bf16.msra.mxu0 0
        %1508 = vmatprep.subr.bf16.mxu0 0
        %1509 = vmatpush1.bf16.msra.mxu0 0
        %1510 = vmatprep.subr.bf16.mxu0 0
        %1511 = vmatpush1.bf16.msra.mxu0 0
        %1512 = vmatprep.subr.bf16.mxu0 0
        %1513 = vmatpush1.bf16.msra.mxu0 0
        %1514 = vmatprep.subr.bf16.mxu0 0
        %1515 = vmatpush1.bf16.msra.mxu0 0
        %1516 = vmatprep.subr.bf16.mxu0 0
        %1517 = vmatpush1.bf16.msra.mxu0 0
        %1518 = vmatprep.mubr.bf16.mxu0 0
        %1519 = vmatmul.mubr.bf16.gmra.mrb[0].mxu0 %v1430
        %v1520 = vpop.f32.mrb[0].mxu0
        %v1521 = vadd.f32 0.0, %v1520
        %v1522 = vpop.f32.mrb[0].mxu0
        %v1523 = vpop.f32.mrb[0].mxu0
        %v1524 = vadd.f32 0.0, %v1523
        %v1525 = vpop.f32.mrb[0].mxu0
        %1526 = vmatprep.mubr.bf16.mxu0 0
        %1527 = vmatmul.mubr.bf16.gmra.mrb[0].mxu0 %v1431
        %v1528 = vpop.f32.mrb[0].mxu0
        %v1529 = vadd.f32 0.0, %v1528
        %v1530 = vpop.f32.mrb[0].mxu0
        %v1531 = vpop.f32.mrb[0].mxu0
        %v1532 = vadd.f32 0.0, %v1531
        %v1533 = vpop.f32.mrb[0].mxu0
        %1534 = vmatprep.mubr.bf16.mxu0 0
        %1535 = vmatmul.mubr.bf16.gmra.mrb[0].mxu0 %v1432
        %v1536 = vpop.f32.mrb[0].mxu0
        %v1537 = vadd.f32 0.0, %v1536
        %v1538 = vpop.f32.mrb[0].mxu0
        %v1539 = vpop.f32.mrb[0].mxu0
        %v1540 = vadd.f32 0.0, %v1539
        %v1541 = vpop.f32.mrb[0].mxu0
        %1542 = vmatprep.mubr.bf16.mxu0 0
        %1543 = vmatmul.mubr.bf16.gmra.mrb[0].mxu0 %v1433
        %v1544 = vpop.f32.mrb[0].mxu0
        %v1545 = vadd.f32 0.0, %v1544
        %v1546 = vpop.f32.mrb[0].mxu0
        %v1547 = vpop.f32.mrb[0].mxu0
        %v1548 = vadd.f32 0.0, %v1547
        %v1549 = vpop.f32.mrb[0].mxu0
        %1550 = vdwg.mxu0
        %v1551 = vadd.f32 %v1397, %v1521
        %v1552 = vadd.f32 %v1398, %v1524
        %v1553 = vadd.f32 %v1399, %v1529
        %v1554 = vadd.f32 %v1400, %v1532
        %v1555 = vadd.f32 %v1401, %v1537
        %v1556 = vadd.f32 %v1402, %v1540
        %v1557 = vadd.f32 %v1403, %v1545
        %v1558 = vadd.f32 %v1404, %v1548
        %1559 = vst [vmem:[%s194] sm:$0xff] %v1551
        %1560 = vst [vmem:[%s194 + $0x8] sm:$0xff] %v1552
        %1561 = vst [vmem:[%s194 + $0x10] sm:$0xff] %v1553
        %1562 = vst [vmem:[%s194 + $0x18] sm:$0xff] %v1554
        %1563 = vst [vmem:[%s194 + $0x20] sm:$0xff] %v1555
        %1564 = vst [vmem:[%s194 + $0x28] sm:$0xff] %v1556
        %1565 = vst [vmem:[%s194 + $0x30] sm:$0xff] %v1557
        %1566 = vst [vmem:[%s194 + $0x38] sm:$0xff] %v1558
        %s1567 = scalar_lea.vmem %s211, 8
        %v1568 = vld [vmem:[%s1567] sm:$0xf]
        %v1569 = vld [vmem:[%s1567 + $0x8] sm:$0xf]
        %v1570 = vld [vmem:[%s1567 + $0x10] sm:$0xf]
        %v1571 = vld [vmem:[%s1567 + $0x18] sm:$0xf]
        %v1572 = vld [vmem:[%s1567 + $0x20] sm:$0xf]
        %v1573 = vld [vmem:[%s1567 + $0x28] sm:$0xf]
        %v1574 = vld [vmem:[%s1567 + $0x30] sm:$0xf]
        %v1575 = vld [vmem:[%s1567 + $0x38] sm:$0xf]
        %v1576 = vld [vmem:[%s194] sm:$0xff]
        %v1577 = vld [vmem:[%s194 + $0x8] sm:$0xff]
        %v1578 = vld [vmem:[%s194 + $0x10] sm:$0xff]
        %v1579 = vld [vmem:[%s194 + $0x18] sm:$0xff]
        %v1580 = vld [vmem:[%s194 + $0x20] sm:$0xff]
        %v1581 = vld [vmem:[%s194 + $0x28] sm:$0xff]
        %v1582 = vld [vmem:[%s194 + $0x30] sm:$0xff]
        %v1583 = vld [vmem:[%s194 + $0x38] sm:$0xff]
        %s1584 = scalar_lea.vmem %s1, 384
        %v1585 = vld [vmem:[%s1584] sm:$0xf]
        %v1586 = vld [vmem:[%s1584 + $0x4] sm:$0xf]
        %v1587 = vld [vmem:[%s1584 + $0x8] sm:$0xf]
        %v1588 = vld [vmem:[%s1584 + $0xc] sm:$0xf]
        %v1589 = vld [vmem:[%s1584 + $0x10] sm:$0xf]
        %v1590 = vld [vmem:[%s1584 + $0x14] sm:$0xf]
        %v1591 = vld [vmem:[%s1584 + $0x18] sm:$0xf]
        %v1592 = vld [vmem:[%s1584 + $0x1c] sm:$0xf]
        %v1593 = vld [vmem:[%s1584 + $0x20] sm:$0xf]
        %v1594 = vld [vmem:[%s1584 + $0x24] sm:$0xf]
        %v1595 = vld [vmem:[%s1584 + $0x28] sm:$0xf]
        %v1596 = vld [vmem:[%s1584 + $0x2c] sm:$0xf]
        %v1597 = vld [vmem:[%s1584 + $0x30] sm:$0xf]
        %v1598 = vld [vmem:[%s1584 + $0x34] sm:$0xf]
        %v1599 = vld [vmem:[%s1584 + $0x38] sm:$0xf]
        %v1600 = vld [vmem:[%s1584 + $0x3c] sm:$0xf]
        %v1609 = vunpack.c.l.b16 %v1568
        %v1610 = vunpack.c.l.b16 %v1569
        %v1611 = vunpack.c.l.b16 %v1570
        %v1612 = vunpack.c.l.b16 %v1571
        %v1613 = vunpack.c.l.b16 %v1572
        %v1614 = vunpack.c.l.b16 %v1573
        %v1615 = vunpack.c.l.b16 %v1574
        %v1616 = vunpack.c.l.b16 %v1575
        %v1617 = vpack.c.b16 %v1610, %v1609
        %v1618 = vpack.c.b16 %v1612, %v1611
        %v1619 = vpack.c.b16 %v1614, %v1613
        %v1620 = vpack.c.b16 %v1616, %v1615
        %v1641 = vunpack.c.l.b16 %v1585
        %v1642 = vunpack.c.l.b16 %v1586
        %v1643 = vunpack.c.l.b16 %v1587
        %v1644 = vunpack.c.l.b16 %v1588
        %v1645 = vunpack.c.l.b16 %v1589
        %v1646 = vunpack.c.l.b16 %v1590
        %v1647 = vunpack.c.l.b16 %v1591
        %v1648 = vunpack.c.l.b16 %v1592
        %v1649 = vunpack.c.l.b16 %v1593
        %v1650 = vunpack.c.l.b16 %v1594
        %v1651 = vunpack.c.l.b16 %v1595
        %v1652 = vunpack.c.l.b16 %v1596
        %v1653 = vunpack.c.l.b16 %v1597
        %v1654 = vunpack.c.l.b16 %v1598
        %v1655 = vunpack.c.l.b16 %v1599
        %v1656 = vunpack.c.l.b16 %v1600
        %v1657 = vpack.c.b16 %v1642, %v1641
        %v1658 = vpack.c.b16 %v1644, %v1643
        %v1659 = vpack.c.b16 %v1646, %v1645
        %v1660 = vpack.c.b16 %v1648, %v1647
        %v1661 = vpack.c.b16 %v1650, %v1649
        %v1662 = vpack.c.b16 %v1652, %v1651
        %v1663 = vpack.c.b16 %v1654, %v1653
        %v1664 = vpack.c.b16 %v1656, %v1655
        %1673 = vmatprep.subr.bf16.mxu0 0
        %1674 = vmatpush1.bf16.msra.mxu0 %v1657
        %1675 = vmatprep.subr.bf16.mxu0 0
        %1676 = vmatpush1.bf16.msra.mxu0 %v1658
        %1677 = vmatprep.subr.bf16.mxu0 0
        %1678 = vmatpush1.bf16.msra.mxu0 %v1659
        %1679 = vmatprep.subr.bf16.mxu0 0
        %1680 = vmatpush1.bf16.msra.mxu0 %v1660
        %1681 = vmatprep.subr.bf16.mxu0 0
        %1682 = vmatpush1.bf16.msra.mxu0 %v1661
        %1683 = vmatprep.subr.bf16.mxu0 0
        %1684 = vmatpush1.bf16.msra.mxu0 %v1662
        %1685 = vmatprep.subr.bf16.mxu0 0
        %1686 = vmatpush1.bf16.msra.mxu0 %v1663
        %1687 = vmatprep.subr.bf16.mxu0 0
        %1688 = vmatpush1.bf16.msra.mxu0 %v1664
        %1689 = vmatprep.subr.bf16.mxu0 0
        %1690 = vmatpush1.bf16.msra.mxu0 0
        %1691 = vmatprep.subr.bf16.mxu0 0
        %1692 = vmatpush1.bf16.msra.mxu0 0
        %1693 = vmatprep.subr.bf16.mxu0 0
        %1694 = vmatpush1.bf16.msra.mxu0 0
        %1695 = vmatprep.subr.bf16.mxu0 0
        %1696 = vmatpush1.bf16.msra.mxu0 0
        %1697 = vmatprep.subr.bf16.mxu0 0
        %1698 = vmatpush1.bf16.msra.mxu0 0
        %1699 = vmatprep.subr.bf16.mxu0 0
        %1700 = vmatpush1.bf16.msra.mxu0 0
        %1701 = vmatprep.subr.bf16.mxu0 0
        %1702 = vmatpush1.bf16.msra.mxu0 0
        %1703 = vmatprep.subr.bf16.mxu0 0
        %1704 = vmatpush1.bf16.msra.mxu0 0
        %1705 = vmatprep.mubr.bf16.mxu0 0
        %1706 = vmatmul.mubr.bf16.gmra.mrb[0].mxu0 %v1617
        %v1707 = vpop.f32.mrb[0].mxu0
        %v1708 = vadd.f32 0.0, %v1707
        %v1709 = vpop.f32.mrb[0].mxu0
        %v1710 = vpop.f32.mrb[0].mxu0
        %v1711 = vadd.f32 0.0, %v1710
        %v1712 = vpop.f32.mrb[0].mxu0
        %1713 = vmatprep.mubr.bf16.mxu0 0
        %1714 = vmatmul.mubr.bf16.gmra.mrb[0].mxu0 %v1618
        %v1715 = vpop.f32.mrb[0].mxu0
        %v1716 = vadd.f32 0.0, %v1715
        %v1717 = vpop.f32.mrb[0].mxu0
        %v1718 = vpop.f32.mrb[0].mxu0
        %v1719 = vadd.f32 0.0, %v1718
        %v1720 = vpop.f32.mrb[0].mxu0
        %1721 = vmatprep.mubr.bf16.mxu0 0
        %1722 = vmatmul.mubr.bf16.gmra.mrb[0].mxu0 %v1619
        %v1723 = vpop.f32.mrb[0].mxu0
        %v1724 = vadd.f32 0.0, %v1723
        %v1725 = vpop.f32.mrb[0].mxu0
        %v1726 = vpop.f32.mrb[0].mxu0
        %v1727 = vadd.f32 0.0, %v1726
        %v1728 = vpop.f32.mrb[0].mxu0
        %1729 = vmatprep.mubr.bf16.mxu0 0
        %1730 = vmatmul.mubr.bf16.gmra.mrb[0].mxu0 %v1620
        %v1731 = vpop.f32.mrb[0].mxu0
        %v1732 = vadd.f32 0.0, %v1731
        %v1733 = vpop.f32.mrb[0].mxu0
        %v1734 = vpop.f32.mrb[0].mxu0
        %v1735 = vadd.f32 0.0, %v1734
        %v1736 = vpop.f32.mrb[0].mxu0
        %1737 = vdwg.mxu0
        %v1738 = vadd.f32 %v1576, %v1708
        %v1739 = vadd.f32 %v1577, %v1711
        %v1740 = vadd.f32 %v1578, %v1716
        %v1741 = vadd.f32 %v1579, %v1719
        %v1742 = vadd.f32 %v1580, %v1724
        %v1743 = vadd.f32 %v1581, %v1727
        %v1744 = vadd.f32 %v1582, %v1732
        %v1745 = vadd.f32 %v1583, %v1735
        %1746 = vst [vmem:[%s194] sm:$0xff] %v1738
        %1747 = vst [vmem:[%s194 + $0x8] sm:$0xff] %v1739
        %1748 = vst [vmem:[%s194 + $0x10] sm:$0xff] %v1740
        %1749 = vst [vmem:[%s194 + $0x18] sm:$0xff] %v1741
        %1750 = vst [vmem:[%s194 + $0x20] sm:$0xff] %v1742
        %1751 = vst [vmem:[%s194 + $0x28] sm:$0xff] %v1743
        %1752 = vst [vmem:[%s194 + $0x30] sm:$0xff] %v1744
        %1753 = vst [vmem:[%s194 + $0x38] sm:$0xff] %v1745
        %s1754 = scalar_lea.vmem %s211, 80
        %v1755 = vld [vmem:[%s1754] sm:$0xf]
        %v1756 = vld [vmem:[%s1754 + $0x8] sm:$0xf]
        %v1757 = vld [vmem:[%s1754 + $0x10] sm:$0xf]
        %v1758 = vld [vmem:[%s1754 + $0x18] sm:$0xf]
        %v1759 = vld [vmem:[%s1754 + $0x20] sm:$0xf]
        %v1760 = vld [vmem:[%s1754 + $0x28] sm:$0xf]
        %v1761 = vld [vmem:[%s1754 + $0x30] sm:$0xf]
        %v1762 = vld [vmem:[%s1754 + $0x38] sm:$0xf]
        %v1763 = vld [vmem:[%s194] sm:$0xff]
        %v1764 = vld [vmem:[%s194 + $0x8] sm:$0xff]
        %v1765 = vld [vmem:[%s194 + $0x10] sm:$0xff]
        %v1766 = vld [vmem:[%s194 + $0x18] sm:$0xff]
        %v1767 = vld [vmem:[%s194 + $0x20] sm:$0xff]
        %v1768 = vld [vmem:[%s194 + $0x28] sm:$0xff]
        %v1769 = vld [vmem:[%s194 + $0x30] sm:$0xff]
        %v1770 = vld [vmem:[%s194 + $0x38] sm:$0xff]
        %s1771 = scalar_lea.vmem %s1, 448
        %v1772 = vld [vmem:[%s1771] sm:$0xf]
        %v1773 = vld [vmem:[%s1771 + $0x4] sm:$0xf]
        %v1774 = vld [vmem:[%s1771 + $0x8] sm:$0xf]
        %v1775 = vld [vmem:[%s1771 + $0xc] sm:$0xf]
        %v1776 = vld [vmem:[%s1771 + $0x10] sm:$0xf]
        %v1777 = vld [vmem:[%s1771 + $0x14] sm:$0xf]
        %v1778 = vld [vmem:[%s1771 + $0x18] sm:$0xf]
        %v1779 = vld [vmem:[%s1771 + $0x1c] sm:$0xf]
        %v1780 = vld [vmem:[%s1771 + $0x20] sm:$0xf]
        %v1781 = vld [vmem:[%s1771 + $0x24] sm:$0xf]
        %v1782 = vld [vmem:[%s1771 + $0x28] sm:$0xf]
        %v1783 = vld [vmem:[%s1771 + $0x2c] sm:$0xf]
        %v1784 = vld [vmem:[%s1771 + $0x30] sm:$0xf]
        %v1785 = vld [vmem:[%s1771 + $0x34] sm:$0xf]
        %v1786 = vld [vmem:[%s1771 + $0x38] sm:$0xf]
        %v1787 = vld [vmem:[%s1771 + $0x3c] sm:$0xf]
        %v1796 = vunpack.c.l.b16 %v1755
        %v1797 = vunpack.c.l.b16 %v1756
        %v1798 = vunpack.c.l.b16 %v1757
        %v1799 = vunpack.c.l.b16 %v1758
        %v1800 = vunpack.c.l.b16 %v1759
        %v1801 = vunpack.c.l.b16 %v1760
        %v1802 = vunpack.c.l.b16 %v1761
        %v1803 = vunpack.c.l.b16 %v1762
        %v1804 = vpack.c.b16 %v1797, %v1796
        %v1805 = vpack.c.b16 %v1799, %v1798
        %v1806 = vpack.c.b16 %v1801, %v1800
        %v1807 = vpack.c.b16 %v1803, %v1802
        %v1828 = vunpack.c.l.b16 %v1772
        %v1829 = vunpack.c.l.b16 %v1773
        %v1830 = vunpack.c.l.b16 %v1774
        %v1831 = vunpack.c.l.b16 %v1775
        %v1832 = vunpack.c.l.b16 %v1776
        %v1833 = vunpack.c.l.b16 %v1777
        %v1834 = vunpack.c.l.b16 %v1778
        %v1835 = vunpack.c.l.b16 %v1779
        %v1836 = vunpack.c.l.b16 %v1780
        %v1837 = vunpack.c.l.b16 %v1781
        %v1838 = vunpack.c.l.b16 %v1782
        %v1839 = vunpack.c.l.b16 %v1783
        %v1840 = vunpack.c.l.b16 %v1784
        %v1841 = vunpack.c.l.b16 %v1785
        %v1842 = vunpack.c.l.b16 %v1786
        %v1843 = vunpack.c.l.b16 %v1787
        %v1844 = vpack.c.b16 %v1829, %v1828
        %v1845 = vpack.c.b16 %v1831, %v1830
        %v1846 = vpack.c.b16 %v1833, %v1832
        %v1847 = vpack.c.b16 %v1835, %v1834
        %v1848 = vpack.c.b16 %v1837, %v1836
        %v1849 = vpack.c.b16 %v1839, %v1838
        %v1850 = vpack.c.b16 %v1841, %v1840
        %v1851 = vpack.c.b16 %v1843, %v1842
        %1860 = vmatprep.subr.bf16.mxu0 0
        %1861 = vmatpush1.bf16.msra.mxu0 %v1844
        %1862 = vmatprep.subr.bf16.mxu0 0
        %1863 = vmatpush1.bf16.msra.mxu0 %v1845
        %1864 = vmatprep.subr.bf16.mxu0 0
        %1865 = vmatpush1.bf16.msra.mxu0 %v1846
        %1866 = vmatprep.subr.bf16.mxu0 0
        %1867 = vmatpush1.bf16.msra.mxu0 %v1847
        %1868 = vmatprep.subr.bf16.mxu0 0
        %1869 = vmatpush1.bf16.msra.mxu0 %v1848
        %1870 = vmatprep.subr.bf16.mxu0 0
        %1871 = vmatpush1.bf16.msra.mxu0 %v1849
        %1872 = vmatprep.subr.bf16.mxu0 0
        %1873 = vmatpush1.bf16.msra.mxu0 %v1850
        %1874 = vmatprep.subr.bf16.mxu0 0
        %1875 = vmatpush1.bf16.msra.mxu0 %v1851
        %1876 = vmatprep.subr.bf16.mxu0 0
        %1877 = vmatpush1.bf16.msra.mxu0 0
        %1878 = vmatprep.subr.bf16.mxu0 0
        %1879 = vmatpush1.bf16.msra.mxu0 0
        %1880 = vmatprep.subr.bf16.mxu0 0
        %1881 = vmatpush1.bf16.msra.mxu0 0
        %1882 = vmatprep.subr.bf16.mxu0 0
        %1883 = vmatpush1.bf16.msra.mxu0 0
        %1884 = vmatprep.subr.bf16.mxu0 0
        %1885 = vmatpush1.bf16.msra.mxu0 0
        %1886 = vmatprep.subr.bf16.mxu0 0
        %1887 = vmatpush1.bf16.msra.mxu0 0
        %1888 = vmatprep.subr.bf16.mxu0 0
        %1889 = vmatpush1.bf16.msra.mxu0 0
        %1890 = vmatprep.subr.bf16.mxu0 0
        %1891 = vmatpush1.bf16.msra.mxu0 0
        %1892 = vmatprep.mubr.bf16.mxu0 0
        %1893 = vmatmul.mubr.bf16.gmra.mrb[0].mxu0 %v1804
        %v1894 = vpop.f32.mrb[0].mxu0
        %v1895 = vadd.f32 0.0, %v1894
        %v1896 = vpop.f32.mrb[0].mxu0
        %v1897 = vpop.f32.mrb[0].mxu0
        %v1898 = vadd.f32 0.0, %v1897
        %v1899 = vpop.f32.mrb[0].mxu0
        %1900 = vmatprep.mubr.bf16.mxu0 0
        %1901 = vmatmul.mubr.bf16.gmra.mrb[0].mxu0 %v1805
        %v1902 = vpop.f32.mrb[0].mxu0
        %v1903 = vadd.f32 0.0, %v1902
        %v1904 = vpop.f32.mrb[0].mxu0
        %v1905 = vpop.f32.mrb[0].mxu0
        %v1906 = vadd.f32 0.0, %v1905
        %v1907 = vpop.f32.mrb[0].mxu0
        %1908 = vmatprep.mubr.bf16.mxu0 0
        %1909 = vmatmul.mubr.bf16.gmra.mrb[0].mxu0 %v1806
        %v1910 = vpop.f32.mrb[0].mxu0
        %v1911 = vadd.f32 0.0, %v1910
        %v1912 = vpop.f32.mrb[0].mxu0
        %v1913 = vpop.f32.mrb[0].mxu0
        %v1914 = vadd.f32 0.0, %v1913
        %v1915 = vpop.f32.mrb[0].mxu0
        %1916 = vmatprep.mubr.bf16.mxu0 0
        %1917 = vmatmul.mubr.bf16.gmra.mrb[0].mxu0 %v1807
        %v1918 = vpop.f32.mrb[0].mxu0
        %v1919 = vadd.f32 0.0, %v1918
        %v1920 = vpop.f32.mrb[0].mxu0
        %v1921 = vpop.f32.mrb[0].mxu0
        %v1922 = vadd.f32 0.0, %v1921
        %v1923 = vpop.f32.mrb[0].mxu0
        %1924 = vdwg.mxu0
        %v1925 = vadd.f32 %v1763, %v1895
        %v1926 = vadd.f32 %v1764, %v1898
        %v1927 = vadd.f32 %v1765, %v1903
        %v1928 = vadd.f32 %v1766, %v1906
        %v1929 = vadd.f32 %v1767, %v1911
        %v1930 = vadd.f32 %v1768, %v1914
        %v1931 = vadd.f32 %v1769, %v1919
        %v1932 = vadd.f32 %v1770, %v1922
        %1933 = vst [vmem:[%s194] sm:$0xff] %v1925
        %1934 = vst [vmem:[%s194 + $0x8] sm:$0xff] %v1926
        %1935 = vst [vmem:[%s194 + $0x10] sm:$0xff] %v1927
        %1936 = vst [vmem:[%s194 + $0x18] sm:$0xff] %v1928
        %1937 = vst [vmem:[%s194 + $0x20] sm:$0xff] %v1929
        %1938 = vst [vmem:[%s194 + $0x28] sm:$0xff] %v1930
        %1939 = vst [vmem:[%s194 + $0x30] sm:$0xff] %v1931
        %1940 = vst [vmem:[%s194 + $0x38] sm:$0xff] %v1932
        %v1941 = vld [vmem:[%s1567] sm:$0xf]
        %v1942 = vld [vmem:[%s1567 + $0x4] sm:$0x1]
        %v1943 = vld [vmem:[%s1567 + $0x8] sm:$0xf]
        %v1944 = vld [vmem:[%s1567 + $0xc] sm:$0x1]
        %v1945 = vld [vmem:[%s1567 + $0x10] sm:$0xf]
        %v1946 = vld [vmem:[%s1567 + $0x14] sm:$0x1]
        %v1947 = vld [vmem:[%s1567 + $0x18] sm:$0xf]
        %v1948 = vld [vmem:[%s1567 + $0x1c] sm:$0x1]
        %v1949 = vld [vmem:[%s1567 + $0x20] sm:$0xf]
        %v1950 = vld [vmem:[%s1567 + $0x24] sm:$0x1]
        %v1951 = vld [vmem:[%s1567 + $0x28] sm:$0xf]
        %v1952 = vld [vmem:[%s1567 + $0x2c] sm:$0x1]
        %v1953 = vld [vmem:[%s1567 + $0x30] sm:$0xf]
        %v1954 = vld [vmem:[%s1567 + $0x34] sm:$0x1]
        %v1955 = vld [vmem:[%s1567 + $0x38] sm:$0xf]
        %v1956 = vld [vmem:[%s1567 + $0x3c] sm:$0x1]
        %v1958 = vshrl.u32 %v1941, 16
        %v1960 = vrot.slane %v1958, 4
        %v1961 = vshll.u32 %v1941, 16
        %v1963 = vrot.slane %v1961, 5
        %v1964 = vor.u32 %v1960, %v1963
        %v1965 = vrot.slane %v1964, 4
        %v1967 = vshll.u32 %v1942, 16
        %v1969 = vrot.slane %v1967, 5
        %v1970 = vsel %vm612, %v1965, %v1969
        %v1972 = vshrl.u32 %v1943, 16
        %v1974 = vrot.slane %v1972, 4
        %v1975 = vshll.u32 %v1943, 16
        %v1977 = vrot.slane %v1975, 5
        %v1978 = vor.u32 %v1974, %v1977
        %v1979 = vrot.slane %v1978, 4
        %v1981 = vshll.u32 %v1944, 16
        %v1983 = vrot.slane %v1981, 5
        %v1984 = vsel %vm612, %v1979, %v1983
        %v1986 = vshrl.u32 %v1945, 16
        %v1988 = vrot.slane %v1986, 4
        %v1989 = vshll.u32 %v1945, 16
        %v1991 = vrot.slane %v1989, 5
        %v1992 = vor.u32 %v1988, %v1991
        %v1993 = vrot.slane %v1992, 4
        %v1995 = vshll.u32 %v1946, 16
        %v1997 = vrot.slane %v1995, 5
        %v1998 = vsel %vm612, %v1993, %v1997
        %v2000 = vshrl.u32 %v1947, 16
        %v2002 = vrot.slane %v2000, 4
        %v2003 = vshll.u32 %v1947, 16
        %v2005 = vrot.slane %v2003, 5
        %v2006 = vor.u32 %v2002, %v2005
        %v2007 = vrot.slane %v2006, 4
        %v2009 = vshll.u32 %v1948, 16
        %v2011 = vrot.slane %v2009, 5
        %v2012 = vsel %vm612, %v2007, %v2011
        %v2014 = vshrl.u32 %v1949, 16
        %v2016 = vrot.slane %v2014, 4
        %v2017 = vshll.u32 %v1949, 16
        %v2019 = vrot.slane %v2017, 5
        %v2020 = vor.u32 %v2016, %v2019
        %v2021 = vrot.slane %v2020, 4
        %v2023 = vshll.u32 %v1950, 16
        %v2025 = vrot.slane %v2023, 5
        %v2026 = vsel %vm612, %v2021, %v2025
        %v2028 = vshrl.u32 %v1951, 16
        %v2030 = vrot.slane %v2028, 4
        %v2031 = vshll.u32 %v1951, 16
        %v2033 = vrot.slane %v2031, 5
        %v2034 = vor.u32 %v2030, %v2033
        %v2035 = vrot.slane %v2034, 4
        %v2037 = vshll.u32 %v1952, 16
        %v2039 = vrot.slane %v2037, 5
        %v2040 = vsel %vm612, %v2035, %v2039
        %v2042 = vshrl.u32 %v1953, 16
        %v2044 = vrot.slane %v2042, 4
        %v2045 = vshll.u32 %v1953, 16
        %v2047 = vrot.slane %v2045, 5
        %v2048 = vor.u32 %v2044, %v2047
        %v2049 = vrot.slane %v2048, 4
        %v2051 = vshll.u32 %v1954, 16
        %v2053 = vrot.slane %v2051, 5
        %v2054 = vsel %vm612, %v2049, %v2053
        %v2056 = vshrl.u32 %v1955, 16
        %v2058 = vrot.slane %v2056, 4
        %v2059 = vshll.u32 %v1955, 16
        %v2061 = vrot.slane %v2059, 5
        %v2062 = vor.u32 %v2058, %v2061
        %v2063 = vrot.slane %v2062, 4
        %v2065 = vshll.u32 %v1956, 16
        %v2067 = vrot.slane %v2065, 5
        %v2068 = vsel %vm612, %v2063, %v2067
        %v2069 = vld [vmem:[%s194] sm:$0xff]
        %v2070 = vld [vmem:[%s194 + $0x8] sm:$0xff]
        %v2071 = vld [vmem:[%s194 + $0x10] sm:$0xff]
        %v2072 = vld [vmem:[%s194 + $0x18] sm:$0xff]
        %v2073 = vld [vmem:[%s194 + $0x20] sm:$0xff]
        %v2074 = vld [vmem:[%s194 + $0x28] sm:$0xff]
        %v2075 = vld [vmem:[%s194 + $0x30] sm:$0xff]
        %v2076 = vld [vmem:[%s194 + $0x38] sm:$0xff]
        %s2077 = scalar_lea.vmem %s1, 512
        %v2078 = vld [vmem:[%s2077] sm:$0xf]
        %v2079 = vld [vmem:[%s2077 + $0x4] sm:$0xf]
        %v2080 = vld [vmem:[%s2077 + $0x8] sm:$0xf]
        %v2081 = vld [vmem:[%s2077 + $0xc] sm:$0xf]
        %v2082 = vld [vmem:[%s2077 + $0x10] sm:$0xf]
        %v2083 = vld [vmem:[%s2077 + $0x14] sm:$0xf]
        %v2084 = vld [vmem:[%s2077 + $0x18] sm:$0xf]
        %v2085 = vld [vmem:[%s2077 + $0x1c] sm:$0xf]
        %v2086 = vld [vmem:[%s2077 + $0x20] sm:$0xf]
        %v2087 = vld [vmem:[%s2077 + $0x24] sm:$0xf]
        %v2088 = vld [vmem:[%s2077 + $0x28] sm:$0xf]
        %v2089 = vld [vmem:[%s2077 + $0x2c] sm:$0xf]
        %v2090 = vld [vmem:[%s2077 + $0x30] sm:$0xf]
        %v2091 = vld [vmem:[%s2077 + $0x34] sm:$0xf]
        %v2092 = vld [vmem:[%s2077 + $0x38] sm:$0xf]
        %v2093 = vld [vmem:[%s2077 + $0x3c] sm:$0xf]
        %v2094 = vunpack.c.l.b16 %v1970
        %v2095 = vunpack.c.l.b16 %v1984
        %v2096 = vunpack.c.l.b16 %v1998
        %v2097 = vunpack.c.l.b16 %v2012
        %v2098 = vunpack.c.l.b16 %v2026
        %v2099 = vunpack.c.l.b16 %v2040
        %v2100 = vunpack.c.l.b16 %v2054
        %v2101 = vunpack.c.l.b16 %v2068
        %v2102 = vpack.c.b16 %v2095, %v2094
        %v2103 = vpack.c.b16 %v2097, %v2096
        %v2104 = vpack.c.b16 %v2099, %v2098
        %v2105 = vpack.c.b16 %v2101, %v2100
        %v2126 = vunpack.c.l.b16 %v2078
        %v2127 = vunpack.c.l.b16 %v2079
        %v2128 = vunpack.c.l.b16 %v2080
        %v2129 = vunpack.c.l.b16 %v2081
        %v2130 = vunpack.c.l.b16 %v2082
        %v2131 = vunpack.c.l.b16 %v2083
        %v2132 = vunpack.c.l.b16 %v2084
        %v2133 = vunpack.c.l.b16 %v2085
        %v2134 = vunpack.c.l.b16 %v2086
        %v2135 = vunpack.c.l.b16 %v2087
        %v2136 = vunpack.c.l.b16 %v2088
        %v2137 = vunpack.c.l.b16 %v2089
        %v2138 = vunpack.c.l.b16 %v2090
        %v2139 = vunpack.c.l.b16 %v2091
        %v2140 = vunpack.c.l.b16 %v2092
        %v2141 = vunpack.c.l.b16 %v2093
        %v2142 = vpack.c.b16 %v2127, %v2126
        %v2143 = vpack.c.b16 %v2129, %v2128
        %v2144 = vpack.c.b16 %v2131, %v2130
        %v2145 = vpack.c.b16 %v2133, %v2132
        %v2146 = vpack.c.b16 %v2135, %v2134
        %v2147 = vpack.c.b16 %v2137, %v2136
        %v2148 = vpack.c.b16 %v2139, %v2138
        %v2149 = vpack.c.b16 %v2141, %v2140
        %2158 = vmatprep.subr.bf16.mxu0 0
        %2159 = vmatpush1.bf16.msra.mxu0 %v2142
        %2160 = vmatprep.subr.bf16.mxu0 0
        %2161 = vmatpush1.bf16.msra.mxu0 %v2143
        %2162 = vmatprep.subr.bf16.mxu0 0
        %2163 = vmatpush1.bf16.msra.mxu0 %v2144
        %2164 = vmatprep.subr.bf16.mxu0 0
        %2165 = vmatpush1.bf16.msra.mxu0 %v2145
        %2166 = vmatprep.subr.bf16.mxu0 0
        %2167 = vmatpush1.bf16.msra.mxu0 %v2146
        %2168 = vmatprep.subr.bf16.mxu0 0
        %2169 = vmatpush1.bf16.msra.mxu0 %v2147
        %2170 = vmatprep.subr.bf16.mxu0 0
        %2171 = vmatpush1.bf16.msra.mxu0 %v2148
        %2172 = vmatprep.subr.bf16.mxu0 0
        %2173 = vmatpush1.bf16.msra.mxu0 %v2149
        %2174 = vmatprep.subr.bf16.mxu0 0
        %2175 = vmatpush1.bf16.msra.mxu0 0
        %2176 = vmatprep.subr.bf16.mxu0 0
        %2177 = vmatpush1.bf16.msra.mxu0 0
        %2178 = vmatprep.subr.bf16.mxu0 0
        %2179 = vmatpush1.bf16.msra.mxu0 0
        %2180 = vmatprep.subr.bf16.mxu0 0
        %2181 = vmatpush1.bf16.msra.mxu0 0
        %2182 = vmatprep.subr.bf16.mxu0 0
        %2183 = vmatpush1.bf16.msra.mxu0 0
        %2184 = vmatprep.subr.bf16.mxu0 0
        %2185 = vmatpush1.bf16.msra.mxu0 0
        %2186 = vmatprep.subr.bf16.mxu0 0
        %2187 = vmatpush1.bf16.msra.mxu0 0
        %2188 = vmatprep.subr.bf16.mxu0 0
        %2189 = vmatpush1.bf16.msra.mxu0 0
        %2190 = vmatprep.mubr.bf16.mxu0 0
        %2191 = vmatmul.mubr.bf16.gmra.mrb[0].mxu0 %v2102
        %v2192 = vpop.f32.mrb[0].mxu0
        %v2193 = vadd.f32 0.0, %v2192
        %v2194 = vpop.f32.mrb[0].mxu0
        %v2195 = vpop.f32.mrb[0].mxu0
        %v2196 = vadd.f32 0.0, %v2195
        %v2197 = vpop.f32.mrb[0].mxu0
        %2198 = vmatprep.mubr.bf16.mxu0 0
        %2199 = vmatmul.mubr.bf16.gmra.mrb[0].mxu0 %v2103
        %v2200 = vpop.f32.mrb[0].mxu0
        %v2201 = vadd.f32 0.0, %v2200
        %v2202 = vpop.f32.mrb[0].mxu0
        %v2203 = vpop.f32.mrb[0].mxu0
        %v2204 = vadd.f32 0.0, %v2203
        %v2205 = vpop.f32.mrb[0].mxu0
        %2206 = vmatprep.mubr.bf16.mxu0 0
        %2207 = vmatmul.mubr.bf16.gmra.mrb[0].mxu0 %v2104
        %v2208 = vpop.f32.mrb[0].mxu0
        %v2209 = vadd.f32 0.0, %v2208
        %v2210 = vpop.f32.mrb[0].mxu0
        %v2211 = vpop.f32.mrb[0].mxu0
        %v2212 = vadd.f32 0.0, %v2211
        %v2213 = vpop.f32.mrb[0].mxu0
        %2214 = vmatprep.mubr.bf16.mxu0 0
        %2215 = vmatmul.mubr.bf16.gmra.mrb[0].mxu0 %v2105
        %v2216 = vpop.f32.mrb[0].mxu0
        %v2217 = vadd.f32 0.0, %v2216
        %v2218 = vpop.f32.mrb[0].mxu0
        %v2219 = vpop.f32.mrb[0].mxu0
        %v2220 = vadd.f32 0.0, %v2219
        %v2221 = vpop.f32.mrb[0].mxu0
        %2222 = vdwg.mxu0
        %v2223 = vadd.f32 %v2069, %v2193
        %v2224 = vadd.f32 %v2070, %v2196
        %v2225 = vadd.f32 %v2071, %v2201
        %v2226 = vadd.f32 %v2072, %v2204
        %v2227 = vadd.f32 %v2073, %v2209
        %v2228 = vadd.f32 %v2074, %v2212
        %v2229 = vadd.f32 %v2075, %v2217
        %v2230 = vadd.f32 %v2076, %v2220
        %2231 = vst [vmem:[%s194] sm:$0xff] %v2223
        %2232 = vst [vmem:[%s194 + $0x8] sm:$0xff] %v2224
        %2233 = vst [vmem:[%s194 + $0x10] sm:$0xff] %v2225
        %2234 = vst [vmem:[%s194 + $0x18] sm:$0xff] %v2226
        %2235 = vst [vmem:[%s194 + $0x20] sm:$0xff] %v2227
        %2236 = vst [vmem:[%s194 + $0x28] sm:$0xff] %v2228
        %2237 = vst [vmem:[%s194 + $0x30] sm:$0xff] %v2229
        %2238 = vst [vmem:[%s194 + $0x38] sm:$0xff] %v2230
        %v2239 = vld [vmem:[%s194] sm:$0xff]
        %v2240 = vld [vmem:[%s194 + $0x8] sm:$0xff]
        %v2241 = vld [vmem:[%s194 + $0x10] sm:$0xff]
        %v2242 = vld [vmem:[%s194 + $0x18] sm:$0xff]
        %v2243 = vld [vmem:[%s194 + $0x20] sm:$0xff]
        %v2244 = vld [vmem:[%s194 + $0x28] sm:$0xff]
        %v2245 = vld [vmem:[%s194 + $0x30] sm:$0xff]
        %v2246 = vld [vmem:[%s194 + $0x38] sm:$0xff]
        %v2247 = vadd.f32 %v2239, %v2240
        %v2248 = vadd.f32 %v2247, %v2241
        %v2249 = vadd.f32 %v2248, %v2242
        %v2250 = vadd.f32 %v2249, %v2243
        %v2251 = vadd.f32 %v2250, %v2244
        %v2252 = vadd.f32 %v2251, %v2245
        %v2253 = vadd.f32 %v2252, %v2246
        %v2254 = vrot.slane %v2253, 4
        %v2255 = vadd.f32 %v2253, %v2254
        %v2256 = vrot.slane %v2255, 2
        %v2257 = vadd.f32 %v2255, %v2256
        %v2258 = vrot.slane %v2257, 1
        %v2259 = vadd.f32 %v2257, %v2258
        %2260 = vst [vmem:[%s200] sm:$0x1] %v2259
        %v2261 = vmul.f32 %v2239, %v2239
        %v2262 = vmul.f32 %v2240, %v2240
        %v2263 = vmul.f32 %v2241, %v2241
        %v2264 = vmul.f32 %v2242, %v2242
        %v2265 = vmul.f32 %v2243, %v2243
        %v2266 = vmul.f32 %v2244, %v2244
        %v2267 = vmul.f32 %v2245, %v2245
        %v2268 = vmul.f32 %v2246, %v2246
        %v2269 = vadd.f32 %v2261, %v2262
        %v2270 = vadd.f32 %v2269, %v2263
        %v2271 = vadd.f32 %v2270, %v2264
        %v2272 = vadd.f32 %v2271, %v2265
        %v2273 = vadd.f32 %v2272, %v2266
        %v2274 = vadd.f32 %v2273, %v2267
        %v2275 = vadd.f32 %v2274, %v2268
        %v2276 = vrot.slane %v2275, 4
        %v2277 = vadd.f32 %v2275, %v2276
        %v2278 = vrot.slane %v2277, 2
        %v2279 = vadd.f32 %v2277, %v2278
        %v2280 = vrot.slane %v2279, 1
        %v2281 = vadd.f32 %v2279, %v2280
        %2282 = vst [vmem:[%s206] sm:$0x1] %v2281
        %s2283 = sand.u32 %s77, 1
        %s2284 = scalar_lea.sflag [#allocation3], %s2283
        %s2285 = sand.u32 %s77, 1
        %s2286 = smul.addr %s2285, 64
        %s2287 = scalar_lea.vmem [#allocation2], %s2286
        %s2288 = sand.u32 %s22, 1
        %s2289 = scalar_lea.sflag [#allocation5], %s2288
        %s2290 = sand.u32 %s103, 1
        %s2291 = scalar_lea.vmem [#allocation4], %s2290
        %s2292 = sand.u32 %s22, 1
        %s2293 = scalar_lea.sflag [#allocation5], %s2292
        %s2294 = sand.u32 %s129, 1
        %s2295 = scalar_lea.vmem [#allocation6], %s2294
        // Predicated region
        $region29: #{tpu_custom_call.1} parent=27 // pred_check
          %p2296 = pneg %p87
        $region30: #{tpu_custom_call.1} parent=27 // pred_check_branch
          %2298 = sbr.rel (%p2296) target = $region32
        $region31: #{tpu_custom_call.1} parent=27 // pred_region
          %s2299 = smul.u32 8, %s22
          %s2301 = ssub.s32 1024, 1024
          %2302 = vsyncadd %s2284, %s2301
          %s2303 = smul.addr %s2299, 128
          %s2304 = scalar_lea.hbm %s2, %s2303
          %s2305 = sshll.u32 %s2287, 4
          %s2306 = int_to_ptr.vmem [resolvable:$true] %s2305
          %2311 = dma.vmem_to_hbm [thread:$0]  %s2306, 1024, %s2304, %s2284, 128, 128, 8
        $region32: #{tpu_custom_call.1} parent=27 // pred_fallthru
          _
        // Predicated region
        $region33: #{tpu_custom_call.1} parent=27 // pred_check
          %p2312 = pneg %p113
        $region34: #{tpu_custom_call.1} parent=27 // pred_check_branch
          %2314 = sbr.rel (%p2312) target = $region36
        $region35: #{tpu_custom_call.1} parent=27 // pred_region
          %s2316 = ssub.s32 16, 16
          %2317 = vsyncadd %s2289, %s2316
          %s2318 = smul.addr %s22, 16
          %s2319 = scalar_lea.hbm %s3, %s2318
          %s2321 = sshll.u32 %s2291, 4
          %s2322 = int_to_ptr.vmem [resolvable:$true] %s2321
          %2324 = dma.vmem_to_hbm [thread:$0]  %s2322, 16, %s2319, %s2289
        $region36: #{tpu_custom_call.1} parent=27 // pred_fallthru
          _
        // Predicated region
        $region37: #{tpu_custom_call.1} parent=27 // pred_check
          %p2325 = pneg %p139
        $region38: #{tpu_custom_call.1} parent=27 // pred_check_branch
          %2327 = sbr.rel (%p2325) target = $region40
        $region39: #{tpu_custom_call.1} parent=27 // pred_region
          %s2329 = ssub.s32 16, 16
          %2330 = vsyncadd %s2293, %s2329
          %s2331 = smul.addr %s22, 16
          %s2332 = scalar_lea.hbm %s4, %s2331
          %s2334 = sshll.u32 %s2295, 4
          %s2335 = int_to_ptr.vmem [resolvable:$true] %s2334
          %2337 = dma.vmem_to_hbm [thread:$0]  %s2335, 16, %s2332, %s2293
        $region40: #{tpu_custom_call.1} parent=27 // pred_fallthru
          _
      $region28: #{tpu_custom_call.1} parent=5 // pred_fallthru
        _
      %p2338 = scmp.le.s32.totalorder 2, %s17
      // Predicated region
      $region41: #{tpu_custom_call.1} parent=5 // pred_check
        %p2339 = pneg %p2338
      $region42: #{tpu_custom_call.1} parent=5 // pred_check_branch
        %2341 = sbr.rel (%p2339) target = $region44
      $region43: #{tpu_custom_call.1} parent=5 // pred_region
        %s2342 = ssub.s32 %s17, 2
        // Predicated region
        $region45: #{tpu_custom_call.1} parent=43 // pred_check
          %p2343 = pneg %p93
        $region46: #{tpu_custom_call.1} parent=43 // pred_check_branch
          %2345 = sbr.rel (%p2343) target = $region48
        $region47: #{tpu_custom_call.1} parent=43 // pred_region
          %s2346 = sand.u32 %s78, 1
          %s2347 = scalar_lea.sflag [#allocation3], %s2346
          %s2348 = sand.u32 %s78, 1
          %s2349 = smul.addr %s2348, 64
          %s2350 = scalar_lea.vmem [#allocation2], %s2349
          %2351 = dma.done %s2347, 1024
        $region48: #{tpu_custom_call.1} parent=43 // pred_fallthru
          _
        // Predicated region
        $region49: #{tpu_custom_call.1} parent=43 // pred_check
          %p2352 = pneg %p119
        $region50: #{tpu_custom_call.1} parent=43 // pred_check_branch
          %2354 = sbr.rel (%p2352) target = $region52
        $region51: #{tpu_custom_call.1} parent=43 // pred_region
          %s2355 = sand.u32 %s23, 1
          %s2356 = scalar_lea.sflag [#allocation5], %s2355
          %s2357 = sand.u32 %s104, 1
          %s2358 = scalar_lea.vmem [#allocation4], %s2357
          %2359 = dma.done %s2356, 16
        $region52: #{tpu_custom_call.1} parent=43 // pred_fallthru
          _
        // Predicated region
        $region53: #{tpu_custom_call.1} parent=43 // pred_check
          %p2360 = pneg %p145
        $region54: #{tpu_custom_call.1} parent=43 // pred_check_branch
          %2362 = sbr.rel (%p2360) target = $region56
        $region55: #{tpu_custom_call.1} parent=43 // pred_region
          %s2363 = sand.u32 %s23, 1
          %s2364 = scalar_lea.sflag [#allocation5], %s2363
          %s2365 = sand.u32 %s130, 1
          %s2366 = scalar_lea.vmem [#allocation6], %s2365
          %2367 = dma.done %s2364, 16
        $region56: #{tpu_custom_call.1} parent=43 // pred_fallthru
          _
      $region44: #{tpu_custom_call.1} parent=5 // pred_fallthru
        _
    $region6: #{tpu_custom_call.1} parent=1 // loop_footer
      %s21 = sadd.s32 1, %s17
    $region7: #{tpu_custom_call.1} parent=1 // loop_footer_branch
      %16 = sbr.rel target = $region3
    $region8: #{tpu_custom_call.1} parent=1 // loop_exit
      _
    %2368 = vsyncpa [#allocation3], 1
    %s2369 = scalar_lea.sflag [#allocation3], 1
    %2370 = vsyncpa %s2369, 1
    %2371 = vsyncpa [#allocation5], 1
    %s2372 = scalar_lea.sflag [#allocation5], 1
    %2373 = vsyncpa %s2372, 1

</llo_original>
